<compile_context>
chip_gen: v7x
topology: tpu7x:2x2x1
jax: 0.10.0
libtpu: 0.0.40
codegen_flags: <defaults>
</compile_context>

<pallas_src>
import math

import numpy as np
import jax
import jax.numpy as jnp
from jax import lax
from jax.experimental import pallas as pl
from jax.experimental.pallas import tpu as pltpu

NEG_SLOPE = 0.02        # LeakyReLU(negative_slope=0.02)
BN_EPS = 1e-5
BLOCK_B = 8             # images per grid step (keep a multiple of 8)
WEIGHT_DTYPE = jnp.bfloat16


def _leaky(x):
    return jnp.where(x >= 0.0, x, NEG_SLOPE * x)


# ----------------------------- Pallas kernel --------------------------------
def _face_encoder_kernel(x_ref, w1_ref, w2_ref, shift2_ref, wl1_ref, wl2_ref,
                         o_ref):
    f32 = jnp.float32
    bf16 = WEIGHT_DTYPE
    b = x_ref.shape[2]                 # images in this block
    m = 8 * b                          # conv matmul M = row-pairs x images

    # ---- conv1 (3x3, stride 1, pad 1, no bias) + LeakyReLU ------------------
    # x_ref[0]: [9, B, 128]; padded-row pair u holds padded row 2u in lanes
    # 0:64 and padded row 2u+1 in lanes 64:128 (columns flattened (w, cin)).
    xb = x_ref[0]
    x01 = xb[0:8].reshape(m, 128)      # pairs (2v,   2v+1), v = 0..7, v-major
    x12 = xb[1:9].reshape(m, 128)      # pairs (2v+2, 2v+3)
    cat1 = jnp.concatenate([x01, x12], axis=1).astype(bf16)          # [M, 256]
    # One K=256, N=256 matmul: output lanes 0:128 = even conv1 rows (r=2v),
    # lanes 128:256 = odd rows (r=2v+1); columns within each half = wo*8 + co.
    a1 = _leaky(jnp.dot(cat1, w1_ref[...], preferred_element_type=f32))
    a1_e = a1[:, 0:128]                # conv1 rows 0,2,...,14   ([M, 128] f32)
    a1_o = a1[:, 128:256]              # conv1 rows 1,3,...,15

    # ---- conv2 (4x4, stride 2, pad 1) + folded BN2 + LeakyReLU --------------
    # Output row ho uses padded conv1 rows 2ho..2ho+3 =
    #   [a1_o[ho-1] (zero for ho=0), a1_e[ho], a1_o[ho], a1_e[ho+1] (zero for 7)]
    # Shifts are whole-tile outer-dim concats thanks to the row-major layout.
    zrow = jnp.zeros((1, b, 128), f32)
    p_dn = jnp.concatenate([zrow, a1_o.reshape(8, b, 128)[0:7]],
                           axis=0).reshape(m, 128)
    p_up = jnp.concatenate([a1_e.reshape(8, b, 128)[1:8], zrow],
                           axis=0).reshape(m, 128)
    op_a = jnp.concatenate([p_dn, a1_e], axis=1).astype(bf16)   # kh 0,1  [M,256]
    op_b = jnp.concatenate([a1_o, p_up], axis=1).astype(bf16)   # kh 2,3  [M,256]
    acc2 = jnp.dot(op_a, w2_ref[0:256, :], preferred_element_type=f32)
    acc2 = acc2 + jnp.dot(op_b, w2_ref[256:512, :], preferred_element_type=f32)
    # BN2 scale is folded into the w2 columns; add the shift, then activate.
    a2 = _leaky(acc2 + shift2_ref[...])     # [M, 128] = [(ho, b), wo*16 + co]

    # ---- linear1 (1024 -> 128, no bias) + LeakyReLU -------------------------
    # x.view(N, -1) (NCHW flatten) is absorbed into the row-permuted, h-blocked
    # weight wl1[h]; accumulate 8 [B,128]x[128,128] dots over h.
    a2_3 = a2.reshape(8, b, 128)
    l1 = jnp.dot(a2_3[0].astype(bf16), wl1_ref[0], preferred_element_type=f32)
    for h in range(1, 8):
        l1 = l1 + jnp.dot(a2_3[h].astype(bf16), wl1_ref[h],
                          preferred_element_type=f32)
    l1 = _leaky(l1)                         # [B, 128] f32

    # ---- linear2 (128 -> 32, no bias) + LeakyReLU ---------------------------
    # wl2 is zero-padded to 128 output lanes so the store is a full-lane slab.
    l2 = _leaky(jnp.dot(l1.astype(bf16), wl2_ref[...],
                        preferred_element_type=f32))             # [B, 128]
    o_ref[0] = l2


def face_encoder_pallas(xp, prep):
    nb, _, b, _ = xp.shape
    return pl.pallas_call(
        _face_encoder_kernel,
        out_shape=jax.ShapeDtypeStruct((nb, b, 128), jnp.float32),
        grid_spec=pltpu.PrefetchScalarGridSpec(
            num_scalar_prefetch=0,
            grid=(nb,),
            in_specs=[
                pl.BlockSpec((1, 9, b, 128), lambda i: (i, 0, 0, 0)),  # packed input
                pl.BlockSpec((256, 256), lambda i: (0, 0)),            # conv1 (both parities)
                pl.BlockSpec((512, 128), lambda i: (0, 0)),            # conv2 (BN scale folded)
                pl.BlockSpec((1, 128), lambda i: (0, 0)),              # BN2 shift
                pl.BlockSpec((8, 128, 128), lambda i: (0, 0, 0)),      # linear1 h-blocked
                pl.BlockSpec((128, 128), lambda i: (0, 0)),            # linear2^T zero-padded
            ],
            out_specs=pl.BlockSpec((1, b, 128), lambda i: (i, 0, 0)),
        ),
        compiler_params=pltpu.CompilerParams(
            dimension_semantics=("parallel",)),
    )(xp, prep["w1"], prep["w2"], prep["shift2"], prep["wl1"], prep["wl2"])


# ------------------------------- glue ---------------------------------------
def face_encoder_forward(x_nchw, prep, block_b=BLOCK_B):
    """Full FaceEncoder forward.  x_nchw: [N, 4, 16, 16] (PyTorch layout)."""
    n = x_nchw.shape[0]
    nb = (n + block_b - 1) // block_b
    n_pad = nb * block_b
    x = x_nchw.astype(jnp.float32)
    if n_pad != n:
        x = jnp.pad(x, ((0, n_pad - n), (0, 0), (0, 0), (0, 0)))
    # NCHW -> NHWC -> [N_pad, 16, W*Cin=64]   (columns ordered (w, c))
    x2 = jnp.transpose(x, (0, 2, 3, 1)).reshape(n_pad, 16, 64)
    zrow = jnp.zeros((n_pad, 1, 64), jnp.float32)
    x_even = jnp.concatenate([zrow, x2[:, 1::2, :]], axis=1)   # padded rows 0,2,...,16
    x_odd = jnp.concatenate([x2[:, 0::2, :], zrow], axis=1)    # padded rows 1,3,...,17
    xp = jnp.concatenate([x_even, x_odd], axis=2)              # [N_pad, 9, 128]
    # Group images into blocks of block_b and make the padded-row-pair index
    # major so every in-kernel slice is a whole-(B,128)-tile slice.
    xp = xp.reshape(nb, block_b, 9, 128).transpose(0, 2, 1, 3)  # [nb, 9, B, 128]
    out = face_encoder_pallas(xp, prep)                         # [nb, B, 128]
    out = out.reshape(n_pad, 128)[:n, 0:32]
    # [N, 32] -> [N, 32, 1, 1]  (matches unsqueeze(-1).unsqueeze(-1))
    return out.reshape(n, 32, 1, 1)


# ------------------------- weight init & repacking ---------------------------
def init_weights(key):
    """PyTorch-layout params (Conv2d: [out,in,kh,kw]; Linear: [out,in]; bias=False)."""
    k1, k2, k3, k4, k5, k6, k7 = jax.random.split(key, 7)
    w = {}
    w["conv1_w"] = jax.random.normal(k1, (8, 4, 3, 3), jnp.float32) / math.sqrt(4 * 9)
    w["conv2_w"] = jax.random.normal(k2, (16, 8, 4, 4), jnp.float32) / math.sqrt(8 * 16)
    gamma = 1.0 + 0.1 * jax.random.normal(k3, (16,), jnp.float32)
    beta = 0.1 * jax.random.normal(k4, (16,), jnp.float32)
    rmean = 0.05 * jax.random.normal(k5, (16,), jnp.float32)
    rvar = jnp.ones((16,), jnp.float32)
    w["bn2"] = (gamma, beta, rmean, rvar)            # inference-mode running stats
    w["linear1_w"] = jax.random.normal(k6, (128, 1024), jnp.float32) / math.sqrt(1024)
    w["linear2_w"] = jax.random.normal(k7, (32, 128), jnp.float32) / math.sqrt(128)
    return w


def prepare_kernel_weights(w, dtype=WEIGHT_DTYPE):
    """One-time host repack of PyTorch-layout weights into MXU-friendly bf16 operands."""
    w1 = np.asarray(w["conv1_w"], np.float32)      # [co=8,  c=4, kh=3, kw=3]
    w2 = np.asarray(w["conv2_w"], np.float32)      # [co=16, c=8, kh=4, kw=4]
    gamma, beta, rmean, rvar = (np.asarray(t, np.float32) for t in w["bn2"])
    wl1 = np.asarray(w["linear1_w"], np.float32)   # [128, 1024]
    wl2 = np.asarray(w["linear2_w"], np.float32)   # [32, 128]

    # conv1: width-Toeplitz expansion, one [W*Cin, Wout*Cout] = [64,128] slab per kh:
    #   w1kh[kh, (wi-1)*4 + c, wo*8 + co] = w1[co, c, kh, wi - wo]   (wi = padded col)
    w1kh = np.zeros((3, 64, 128), np.float32)
    for kh in range(3):
        for wo in range(16):
            for kw in range(3):
                wi = wo + kw
                if 1 <= wi <= 16:
                    w1kh[kh, (wi - 1) * 4:(wi - 1) * 4 + 4,
                         wo * 8:wo * 8 + 8] = w1[:, :, kh, kw].T
    w1kh = w1kh.reshape(192, 128)
    # Kernel operand row for row-pair v is [even_v | odd_v | even_{v+1} | odd_{v+1}]
    # (K=256).  Place the kh slabs at the right K offsets for each output parity
    # and put both parities side by side along N -> single [256,256] matmul.
    w1s = np.zeros((256, 256), np.float32)
    w1s[0:192, 0:128] = w1kh          # even rows: taps at padded rows 2v..2v+2
    w1s[64:256, 128:256] = w1kh       # odd rows:  taps at padded rows 2v+1..2v+3

    # conv2 (stride 2): per-kh [128,128] Toeplitz slab with BN2 scale folded in,
    # stacked along K to match the [p_dn | a1_e] / [a1_o | p_up] operands.
    w2s = np.zeros((4, 128, 128), np.float32)
    for kh in range(4):
        for wo in range(8):
            for kw in range(4):
                wi = 2 * wo + kw
                if 1 <= wi <= 16:
                    w2s[kh, (wi - 1) * 8:(wi - 1) * 8 + 8,
                        wo * 16:wo * 16 + 16] = w2[:, :, kh, kw].T
    inv = gamma / np.sqrt(rvar + BN_EPS)
    w2s = (w2s * np.tile(inv, 8)[None, None, :]).reshape(512, 128)
    shift2 = np.tile(beta - rmean * inv, 8)[None, :].astype(np.float32)   # [1,128]

    # linear1: permute rows from NCHW-flatten order (c*64 + h*8 + w) to the
    # kernel's (h-block, column = w*16 + c) layout -> [8, 128, 128].
    wl1b = wl1.reshape(128, 16, 8, 8).transpose(2, 3, 1, 0).reshape(8, 128, 128)
    # linear2: transpose and zero-pad the 32 output channels to 128 lanes.
    wl2p = np.zeros((128, 128), np.float32)
    wl2p[:, 0:32] = wl2.T

    return {"w1": jnp.asarray(w1s, dtype),
            "w2": jnp.asarray(w2s, dtype),
            "shift2": jnp.asarray(shift2, jnp.float32),
            "wl1": jnp.asarray(wl1b, dtype),
            "wl2": jnp.asarray(wl2p, dtype)}


# --------------------------- pure-JAX reference ------------------------------
def reference_forward(x_nchw, w):
    hi = lax.Precision.HIGHEST
    y = lax.conv_general_dilated(x_nchw, w["conv1_w"], (1, 1), ((1, 1), (1, 1)),
                                 dimension_numbers=("NCHW", "OIHW", "NCHW"),
                                 precision=hi)
    y = _leaky(y)
    y = lax.conv_general_dilated(y, w["conv2_w"], (2, 2), ((1, 1), (1, 1)),
                                 dimension_numbers=("NCHW", "OIHW", "NCHW"),
                                 precision=hi)
    gamma, beta, rmean, rvar = w["bn2"]
    inv = gamma / jnp.sqrt(rvar + BN_EPS)
    y = y * inv[None, :, None, None] + (beta - rmean * inv)[None, :, None, None]
    y = _leaky(y)
    y = y.reshape(y.shape[0], -1)                     # NCHW flatten, like x.view(N,-1)
    y = _leaky(jnp.dot(y, w["linear1_w"].T, precision=hi))
    y = _leaky(jnp.dot(y, w["linear2_w"].T, precision=hi))
    return y[:, :, None, None]


if __name__ == "__main__":
    key = jax.random.PRNGKey(0)
    kw_, kx, kx2 = jax.random.split(key, 3)
    weights = init_weights(kw_)
    prep = prepare_kernel_weights(weights)

    fwd = jax.jit(face_encoder_forward)
    ref_fn = jax.jit(reference_forward)

    # Small batch (N=2 pads to one block of 8).
    x = jax.random.normal(kx, (2, 4, 16, 16), jnp.float32)   # NCHW, like PyTorch
    out = jax.block_until_ready(fwd(x, prep))
    assert out.shape == (2, 32, 1, 1), out.shape
    assert bool(jnp.all(jnp.isfinite(out)))
    ref = jax.block_until_ready(ref_fn(x, weights))
    err = float(jnp.max(jnp.abs(out - ref)))
    # bf16 matmul operands with f32 accumulation: observed max |err| ~1e-2
    # (the all-f32 variant of this kernel was ~1e-6).
    assert err < 6e-2, f"max abs err vs reference (bf16 path, N=2) = {err}"

    # Larger batch: exercises batch padding (20 -> 24) and a 3-step grid.
    xb = jax.random.normal(kx2, (20, 4, 16, 16), jnp.float32)
    outb = jax.block_until_ready(fwd(xb, prep))
    refb = jax.block_until_ready(ref_fn(xb, weights))
    errb = float(jnp.max(jnp.abs(outb - refb)))
    assert outb.shape == (20, 32, 1, 1), outb.shape
    assert errb < 6e-2, f"max abs err vs reference (bf16 path, N=20) = {errb}"

    print("KERNEL_OK")
</pallas_src>

<mosaic_0001>
module attributes {stable_mosaic.version = 11 : i64} {
  func.func @_face_encoder_kernel(%arg0: i32, %arg1: memref<1x9x8x128xf32, #tpu.memory_space<vmem>>, %arg2: memref<256x256xbf16, #tpu.memory_space<vmem>>, %arg3: memref<512x128xbf16, #tpu.memory_space<vmem>>, %arg4: memref<1x128xf32, #tpu.memory_space<vmem>>, %arg5: memref<8x128x128xbf16, #tpu.memory_space<vmem>>, %arg6: memref<128x128xbf16, #tpu.memory_space<vmem>>, %arg7: memref<1x8x128xf32, #tpu.memory_space<vmem>>) attributes {dimension_semantics = [#tpu.dimension_semantics<parallel>], iteration_bounds = array<i64: 1>, scalar_prefetch = 0 : i64, scratch_operands = 0 : i64, tpu.core_type = #tpu.core_type<tc>, window_params = [{transform_indices = @transform_0, window_bounds = array<i64: 1, 9, 8, 128>}, {pipeline_mode = #tpu.pipeline_mode<synchronous>, transform_indices = @transform_1, window_bounds = array<i64: 256, 256>}, {pipeline_mode = #tpu.pipeline_mode<synchronous>, transform_indices = @transform_2, window_bounds = array<i64: 512, 128>}, {pipeline_mode = #tpu.pipeline_mode<synchronous>, transform_indices = @transform_3, window_bounds = array<i64: 1, 128>}, {pipeline_mode = #tpu.pipeline_mode<synchronous>, transform_indices = @transform_4, window_bounds = array<i64: 8, 128, 128>}, {pipeline_mode = #tpu.pipeline_mode<synchronous>, transform_indices = @transform_5, window_bounds = array<i64: 128, 128>}, {transform_indices = @transform_6, window_bounds = array<i64: 1, 8, 128>}]} {
    %c0 = arith.constant 0 : index
    %c0_0 = arith.constant 0 : index
    %c0_1 = arith.constant 0 : index
    %c0_2 = arith.constant 0 : index
    %0 = vector.load %arg1[%c0, %c0_0, %c0_1, %c0_2] : memref<1x9x8x128xf32, #tpu.memory_space<vmem>>, vector<1x9x8x128xf32>
    %1 = vector.shape_cast %0 : vector<1x9x8x128xf32> to vector<9x8x128xf32>
    %2 = vector.extract_strided_slice %1 {offsets = [0, 0, 0], sizes = [8, 8, 128], strides = [1, 1, 1]} : vector<9x8x128xf32> to vector<8x8x128xf32>
    %3 = vector.shape_cast %2 : vector<8x8x128xf32> to vector<64x128xf32>
    %4 = vector.extract_strided_slice %1 {offsets = [1, 0, 0], sizes = [8, 8, 128], strides = [1, 1, 1]} : vector<9x8x128xf32> to vector<8x8x128xf32>
    %5 = vector.shape_cast %4 : vector<8x8x128xf32> to vector<64x128xf32>
    %6 = tpu.concatenate %3, %5 in 1 : vector<64x128xf32>, vector<64x128xf32> -> vector<64x256xf32>
    %7 = arith.truncf %6 : vector<64x256xf32> to vector<64x256xbf16>
    %c0_3 = arith.constant 0 : index
    %c0_4 = arith.constant 0 : index
    %8 = vector.load %arg2[%c0_3, %c0_4] : memref<256x256xbf16, #tpu.memory_space<vmem>>, vector<256x256xbf16>
    %cst = arith.constant dense<0.000000e+00> : vector<64x256xf32>
    %9 = tpu.matmul %7, %8, %cst {dimension_numbers = #tpu.dot_dimension_numbers<[1], [0], [0], [1], [0, 0, 1, 1], [], []>} : vector<64x256xbf16>, vector<256x256xbf16>, vector<64x256xf32> -> vector<64x256xf32>
    %cst_5 = arith.constant 0.000000e+00 : f32
    %10 = vector.broadcast %cst_5 : f32 to vector<64x256xf32>
    %11 = arith.cmpf oge, %9, %10 : vector<64x256xf32>
    %cst_6 = arith.constant 2.000000e-02 : f32
    %12 = vector.broadcast %cst_6 : f32 to vector<64x256xf32>
    %13 = arith.mulf %12, %9 : vector<64x256xf32>
    %14 = arith.select %11, %9, %13 : vector<64x256xi1>, vector<64x256xf32>
    %15 = vector.extract_strided_slice %14 {offsets = [0, 0], sizes = [64, 128], strides = [1, 1]} : vector<64x256xf32> to vector<64x128xf32>
    %16 = vector.extract_strided_slice %14 {offsets = [0, 128], sizes = [64, 128], strides = [1, 1]} : vector<64x256xf32> to vector<64x128xf32>
    %cst_7 = arith.constant 0.000000e+00 : f32
    %17 = vector.broadcast %cst_7 : f32 to vector<1x8x128xf32>
    %18 = vector.shape_cast %16 : vector<64x128xf32> to vector<8x8x128xf32>
    %19 = vector.extract_strided_slice %18 {offsets = [0, 0, 0], sizes = [7, 8, 128], strides = [1, 1, 1]} : vector<8x8x128xf32> to vector<7x8x128xf32>
    %20 = tpu.concatenate %17, %19 in 0 : vector<1x8x128xf32>, vector<7x8x128xf32> -> vector<8x8x128xf32>
    %21 = vector.shape_cast %20 : vector<8x8x128xf32> to vector<64x128xf32>
    %22 = vector.shape_cast %15 : vector<64x128xf32> to vector<8x8x128xf32>
    %23 = vector.extract_strided_slice %22 {offsets = [1, 0, 0], sizes = [7, 8, 128], strides = [1, 1, 1]} : vector<8x8x128xf32> to vector<7x8x128xf32>
    %24 = tpu.concatenate %23, %17 in 0 : vector<7x8x128xf32>, vector<1x8x128xf32> -> vector<8x8x128xf32>
    %25 = vector.shape_cast %24 : vector<8x8x128xf32> to vector<64x128xf32>
    %26 = tpu.concatenate %21, %15 in 1 : vector<64x128xf32>, vector<64x128xf32> -> vector<64x256xf32>
    %27 = arith.truncf %26 : vector<64x256xf32> to vector<64x256xbf16>
    %28 = tpu.concatenate %16, %25 in 1 : vector<64x128xf32>, vector<64x128xf32> -> vector<64x256xf32>
    %29 = arith.truncf %28 : vector<64x256xf32> to vector<64x256xbf16>
    %c0_8 = arith.constant 0 : index
    %c0_9 = arith.constant 0 : index
    %30 = vector.load %arg3[%c0_8, %c0_9] : memref<512x128xbf16, #tpu.memory_space<vmem>>, vector<256x128xbf16>
    %cst_10 = arith.constant dense<0.000000e+00> : vector<64x128xf32>
    %31 = tpu.matmul %27, %30, %cst_10 {dimension_numbers = #tpu.dot_dimension_numbers<[1], [0], [0], [1], [0, 0, 1, 1], [], []>} : vector<64x256xbf16>, vector<256x128xbf16>, vector<64x128xf32> -> vector<64x128xf32>
    %c256 = arith.constant 256 : index
    %c0_11 = arith.constant 0 : index
    %32 = vector.load %arg3[%c256, %c0_11] : memref<512x128xbf16, #tpu.memory_space<vmem>>, vector<256x128xbf16>
    %cst_12 = arith.constant dense<0.000000e+00> : vector<64x128xf32>
    %33 = tpu.matmul %29, %32, %cst_12 {dimension_numbers = #tpu.dot_dimension_numbers<[1], [0], [0], [1], [0, 0, 1, 1], [], []>} : vector<64x256xbf16>, vector<256x128xbf16>, vector<64x128xf32> -> vector<64x128xf32>
    %34 = arith.addf %31, %33 : vector<64x128xf32>
    %c0_13 = arith.constant 0 : index
    %c0_14 = arith.constant 0 : index
    %35 = vector.load %arg4[%c0_13, %c0_14] : memref<1x128xf32, #tpu.memory_space<vmem>>, vector<1x128xf32>
    %36 = vector.broadcast %35 : vector<1x128xf32> to vector<64x128xf32>
    %37 = arith.addf %34, %36 : vector<64x128xf32>
    %cst_15 = arith.constant 0.000000e+00 : f32
    %38 = vector.broadcast %cst_15 : f32 to vector<64x128xf32>
    %39 = arith.cmpf oge, %37, %38 : vector<64x128xf32>
    %cst_16 = arith.constant 2.000000e-02 : f32
    %40 = vector.broadcast %cst_16 : f32 to vector<64x128xf32>
    %41 = arith.mulf %40, %37 : vector<64x128xf32>
    %42 = arith.select %39, %37, %41 : vector<64x128xi1>, vector<64x128xf32>
    %43 = vector.shape_cast %42 : vector<64x128xf32> to vector<8x8x128xf32>
    %44 = vector.extract_strided_slice %43 {offsets = [0, 0, 0], sizes = [1, 8, 128], strides = [1, 1, 1]} : vector<8x8x128xf32> to vector<1x8x128xf32>
    %45 = vector.shape_cast %44 : vector<1x8x128xf32> to vector<8x128xf32>
    %46 = arith.truncf %45 : vector<8x128xf32> to vector<8x128xbf16>
    %c0_17 = arith.constant 0 : index
    %c0_18 = arith.constant 0 : index
    %c0_19 = arith.constant 0 : index
    %47 = vector.load %arg5[%c0_17, %c0_18, %c0_19] : memref<8x128x128xbf16, #tpu.memory_space<vmem>>, vector<1x128x128xbf16>
    %48 = vector.shape_cast %47 : vector<1x128x128xbf16> to vector<128x128xbf16>
    %cst_20 = arith.constant dense<0.000000e+00> : vector<8x128xf32>
    %49 = tpu.matmul %46, %48, %cst_20 {dimension_numbers = #tpu.dot_dimension_numbers<[1], [0], [0], [1], [0, 0, 1, 1], [], []>} : vector<8x128xbf16>, vector<128x128xbf16>, vector<8x128xf32> -> vector<8x128xf32>
    %50 = vector.extract_strided_slice %43 {offsets = [1, 0, 0], sizes = [1, 8, 128], strides = [1, 1, 1]} : vector<8x8x128xf32> to vector<1x8x128xf32>
    %51 = vector.shape_cast %50 : vector<1x8x128xf32> to vector<8x128xf32>
    %52 = arith.truncf %51 : vector<8x128xf32> to vector<8x128xbf16>
    %c1 = arith.constant 1 : index
    %c0_21 = arith.constant 0 : index
    %c0_22 = arith.constant 0 : index
    %53 = vector.load %arg5[%c1, %c0_21, %c0_22] : memref<8x128x128xbf16, #tpu.memory_space<vmem>>, vector<1x128x128xbf16>
    %54 = vector.shape_cast %53 : vector<1x128x128xbf16> to vector<128x128xbf16>
    %cst_23 = arith.constant dense<0.000000e+00> : vector<8x128xf32>
    %55 = tpu.matmul %52, %54, %cst_23 {dimension_numbers = #tpu.dot_dimension_numbers<[1], [0], [0], [1], [0, 0, 1, 1], [], []>} : vector<8x128xbf16>, vector<128x128xbf16>, vector<8x128xf32> -> vector<8x128xf32>
    %56 = arith.addf %49, %55 : vector<8x128xf32>
    %57 = vector.extract_strided_slice %43 {offsets = [2, 0, 0], sizes = [1, 8, 128], strides = [1, 1, 1]} : vector<8x8x128xf32> to vector<1x8x128xf32>
    %58 = vector.shape_cast %57 : vector<1x8x128xf32> to vector<8x128xf32>
    %59 = arith.truncf %58 : vector<8x128xf32> to vector<8x128xbf16>
    %c2 = arith.constant 2 : index
    %c0_24 = arith.constant 0 : index
    %c0_25 = arith.constant 0 : index
    %60 = vector.load %arg5[%c2, %c0_24, %c0_25] : memref<8x128x128xbf16, #tpu.memory_space<vmem>>, vector<1x128x128xbf16>
    %61 = vector.shape_cast %60 : vector<1x128x128xbf16> to vector<128x128xbf16>
    %cst_26 = arith.constant dense<0.000000e+00> : vector<8x128xf32>
    %62 = tpu.matmul %59, %61, %cst_26 {dimension_numbers = #tpu.dot_dimension_numbers<[1], [0], [0], [1], [0, 0, 1, 1], [], []>} : vector<8x128xbf16>, vector<128x128xbf16>, vector<8x128xf32> -> vector<8x128xf32>
    %63 = arith.addf %56, %62 : vector<8x128xf32>
    %64 = vector.extract_strided_slice %43 {offsets = [3, 0, 0], sizes = [1, 8, 128], strides = [1, 1, 1]} : vector<8x8x128xf32> to vector<1x8x128xf32>
    %65 = vector.shape_cast %64 : vector<1x8x128xf32> to vector<8x128xf32>
    %66 = arith.truncf %65 : vector<8x128xf32> to vector<8x128xbf16>
    %c3 = arith.constant 3 : index
    %c0_27 = arith.constant 0 : index
    %c0_28 = arith.constant 0 : index
    %67 = vector.load %arg5[%c3, %c0_27, %c0_28] : memref<8x128x128xbf16, #tpu.memory_space<vmem>>, vector<1x128x128xbf16>
    %68 = vector.shape_cast %67 : vector<1x128x128xbf16> to vector<128x128xbf16>
    %cst_29 = arith.constant dense<0.000000e+00> : vector<8x128xf32>
    %69 = tpu.matmul %66, %68, %cst_29 {dimension_numbers = #tpu.dot_dimension_numbers<[1], [0], [0], [1], [0, 0, 1, 1], [], []>} : vector<8x128xbf16>, vector<128x128xbf16>, vector<8x128xf32> -> vector<8x128xf32>
    %70 = arith.addf %63, %69 : vector<8x128xf32>
    %71 = vector.extract_strided_slice %43 {offsets = [4, 0, 0], sizes = [1, 8, 128], strides = [1, 1, 1]} : vector<8x8x128xf32> to vector<1x8x128xf32>
    %72 = vector.shape_cast %71 : vector<1x8x128xf32> to vector<8x128xf32>
    %73 = arith.truncf %72 : vector<8x128xf32> to vector<8x128xbf16>
    %c4 = arith.constant 4 : index
    %c0_30 = arith.constant 0 : index
    %c0_31 = arith.constant 0 : index
    %74 = vector.load %arg5[%c4, %c0_30, %c0_31] : memref<8x128x128xbf16, #tpu.memory_space<vmem>>, vector<1x128x128xbf16>
    %75 = vector.shape_cast %74 : vector<1x128x128xbf16> to vector<128x128xbf16>
    %cst_32 = arith.constant dense<0.000000e+00> : vector<8x128xf32>
    %76 = tpu.matmul %73, %75, %cst_32 {dimension_numbers = #tpu.dot_dimension_numbers<[1], [0], [0], [1], [0, 0, 1, 1], [], []>} : vector<8x128xbf16>, vector<128x128xbf16>, vector<8x128xf32> -> vector<8x128xf32>
    %77 = arith.addf %70, %76 : vector<8x128xf32>
    %78 = vector.extract_strided_slice %43 {offsets = [5, 0, 0], sizes = [1, 8, 128], strides = [1, 1, 1]} : vector<8x8x128xf32> to vector<1x8x128xf32>
    %79 = vector.shape_cast %78 : vector<1x8x128xf32> to vector<8x128xf32>
    %80 = arith.truncf %79 : vector<8x128xf32> to vector<8x128xbf16>
    %c5 = arith.constant 5 : index
    %c0_33 = arith.constant 0 : index
    %c0_34 = arith.constant 0 : index
    %81 = vector.load %arg5[%c5, %c0_33, %c0_34] : memref<8x128x128xbf16, #tpu.memory_space<vmem>>, vector<1x128x128xbf16>
    %82 = vector.shape_cast %81 : vector<1x128x128xbf16> to vector<128x128xbf16>
    %cst_35 = arith.constant dense<0.000000e+00> : vector<8x128xf32>
    %83 = tpu.matmul %80, %82, %cst_35 {dimension_numbers = #tpu.dot_dimension_numbers<[1], [0], [0], [1], [0, 0, 1, 1], [], []>} : vector<8x128xbf16>, vector<128x128xbf16>, vector<8x128xf32> -> vector<8x128xf32>
    %84 = arith.addf %77, %83 : vector<8x128xf32>
    %85 = vector.extract_strided_slice %43 {offsets = [6, 0, 0], sizes = [1, 8, 128], strides = [1, 1, 1]} : vector<8x8x128xf32> to vector<1x8x128xf32>
    %86 = vector.shape_cast %85 : vector<1x8x128xf32> to vector<8x128xf32>
    %87 = arith.truncf %86 : vector<8x128xf32> to vector<8x128xbf16>
    %c6 = arith.constant 6 : index
    %c0_36 = arith.constant 0 : index
    %c0_37 = arith.constant 0 : index
    %88 = vector.load %arg5[%c6, %c0_36, %c0_37] : memref<8x128x128xbf16, #tpu.memory_space<vmem>>, vector<1x128x128xbf16>
    %89 = vector.shape_cast %88 : vector<1x128x128xbf16> to vector<128x128xbf16>
    %cst_38 = arith.constant dense<0.000000e+00> : vector<8x128xf32>
    %90 = tpu.matmul %87, %89, %cst_38 {dimension_numbers = #tpu.dot_dimension_numbers<[1], [0], [0], [1], [0, 0, 1, 1], [], []>} : vector<8x128xbf16>, vector<128x128xbf16>, vector<8x128xf32> -> vector<8x128xf32>
    %91 = arith.addf %84, %90 : vector<8x128xf32>
    %92 = vector.extract_strided_slice %43 {offsets = [7, 0, 0], sizes = [1, 8, 128], strides = [1, 1, 1]} : vector<8x8x128xf32> to vector<1x8x128xf32>
    %93 = vector.shape_cast %92 : vector<1x8x128xf32> to vector<8x128xf32>
    %94 = arith.truncf %93 : vector<8x128xf32> to vector<8x128xbf16>
    %c7 = arith.constant 7 : index
    %c0_39 = arith.constant 0 : index
    %c0_40 = arith.constant 0 : index
    %95 = vector.load %arg5[%c7, %c0_39, %c0_40] : memref<8x128x128xbf16, #tpu.memory_space<vmem>>, vector<1x128x128xbf16>
    %96 = vector.shape_cast %95 : vector<1x128x128xbf16> to vector<128x128xbf16>
    %cst_41 = arith.constant dense<0.000000e+00> : vector<8x128xf32>
    %97 = tpu.matmul %94, %96, %cst_41 {dimension_numbers = #tpu.dot_dimension_numbers<[1], [0], [0], [1], [0, 0, 1, 1], [], []>} : vector<8x128xbf16>, vector<128x128xbf16>, vector<8x128xf32> -> vector<8x128xf32>
    %98 = arith.addf %91, %97 : vector<8x128xf32>
    %cst_42 = arith.constant 0.000000e+00 : f32
    %99 = vector.broadcast %cst_42 : f32 to vector<8x128xf32>
    %100 = arith.cmpf oge, %98, %99 : vector<8x128xf32>
    %cst_43 = arith.constant 2.000000e-02 : f32
    %101 = vector.broadcast %cst_43 : f32 to vector<8x128xf32>
    %102 = arith.mulf %101, %98 : vector<8x128xf32>
    %103 = arith.select %100, %98, %102 : vector<8x128xi1>, vector<8x128xf32>
    %104 = arith.truncf %103 : vector<8x128xf32> to vector<8x128xbf16>
    %c0_44 = arith.constant 0 : index
    %c0_45 = arith.constant 0 : index
    %105 = vector.load %arg6[%c0_44, %c0_45] : memref<128x128xbf16, #tpu.memory_space<vmem>>, vector<128x128xbf16>
    %cst_46 = arith.constant dense<0.000000e+00> : vector<8x128xf32>
    %106 = tpu.matmul %104, %105, %cst_46 {dimension_numbers = #tpu.dot_dimension_numbers<[1], [0], [0], [1], [0, 0, 1, 1], [], []>} : vector<8x128xbf16>, vector<128x128xbf16>, vector<8x128xf32> -> vector<8x128xf32>
    %cst_47 = arith.constant 0.000000e+00 : f32
    %107 = vector.broadcast %cst_47 : f32 to vector<8x128xf32>
    %108 = arith.cmpf oge, %106, %107 : vector<8x128xf32>
    %cst_48 = arith.constant 2.000000e-02 : f32
    %109 = vector.broadcast %cst_48 : f32 to vector<8x128xf32>
    %110 = arith.mulf %109, %106 : vector<8x128xf32>
    %111 = arith.select %108, %106, %110 : vector<8x128xi1>, vector<8x128xf32>
    %c0_49 = arith.constant 0 : index
    %c0_50 = arith.constant 0 : index
    %c0_51 = arith.constant 0 : index
    %112 = vector.load %arg7[%c0_49, %c0_50, %c0_51] : memref<1x8x128xf32, #tpu.memory_space<vmem>>, vector<1x8x128xf32>
    %113 = vector.shape_cast %112 : vector<1x8x128xf32> to vector<8x128xf32>
    %114 = vector.shape_cast %111 : vector<8x128xf32> to vector<1x8x128xf32>
    tpu.vector_store %arg7[%c0_49, %c0_50, %c0_51], %114 {strides = array<i32>} : memref<1x8x128xf32, #tpu.memory_space<vmem>>, vector<1x8x128xf32>,
    return
  }
  func.func @transform_0(%arg0: i32) -> (i32, i32, i32, i32) {
    %c0_i32 = arith.constant 0 : i32
    %c0_i32_0 = arith.constant 0 : i32
    %c0_i32_1 = arith.constant 0 : i32
    %c0_i32_2 = arith.constant 0 : i32
    return %arg0, %c0_i32, %c0_i32_0, %c0_i32_1 : i32, i32, i32, i32
  }
  func.func @transform_1(%arg0: i32) -> (i32, i32) {
    %c0_i32 = arith.constant 0 : i32
    %c0_i32_0 = arith.constant 0 : i32
    %c0_i32_1 = arith.constant 0 : i32
    return %c0_i32, %c0_i32_0 : i32, i32
  }
  func.func @transform_2(%arg0: i32) -> (i32, i32) {
    %c0_i32 = arith.constant 0 : i32
    %c0_i32_0 = arith.constant 0 : i32
    %c0_i32_1 = arith.constant 0 : i32
    return %c0_i32, %c0_i32_0 : i32, i32
  }
  func.func @transform_3(%arg0: i32) -> (i32, i32) {
    %c0_i32 = arith.constant 0 : i32
    %c0_i32_0 = arith.constant 0 : i32
    %c0_i32_1 = arith.constant 0 : i32
    return %c0_i32, %c0_i32_0 : i32, i32
  }
  func.func @transform_4(%arg0: i32) -> (i32, i32, i32) {
    %c0_i32 = arith.constant 0 : i32
    %c0_i32_0 = arith.constant 0 : i32
    %c0_i32_1 = arith.constant 0 : i32
    %c0_i32_2 = arith.constant 0 : i32
    return %c0_i32, %c0_i32_0, %c0_i32_1 : i32, i32, i32
  }
  func.func @transform_5(%arg0: i32) -> (i32, i32) {
    %c0_i32 = arith.constant 0 : i32
    %c0_i32_0 = arith.constant 0 : i32
    %c0_i32_1 = arith.constant 0 : i32
    return %c0_i32, %c0_i32_0 : i32, i32
  }
  func.func @transform_6(%arg0: i32) -> (i32, i32, i32) {
    %c0_i32 = arith.constant 0 : i32
    %c0_i32_0 = arith.constant 0 : i32
    %c0_i32_1 = arith.constant 0 : i32
    return %arg0, %c0_i32, %c0_i32_0 : i32, i32, i32
  }
}

</mosaic_0001>

<llo_original>
// kernel: face_encoder_forward.1
$region0: #{face_encoder_forward.1}
  #allocation0 [shape = 'u32[]', space=smem, size = 0x4, offset = 0x4, fixed_abs, tag = 'smem constant byte address 0x4 - core index']
  #allocation1 [shape = 'u32[144,128]{1,0:T(1,128)}', space=vmem, size = 0x12000, scoped, tag = 'internal scratch']
  %s0 = inlined_call_operand.vmem [shape: f32[1,9,8,128], index: 0, kind: input, shape index: {}]
  %s1 = inlined_call_operand.vmem [shape: bf16[256,256], index: 1, kind: input, shape index: {}]
  %s2 = inlined_call_operand.vmem [shape: bf16[512,128], index: 2, kind: input, shape index: {}]
  %s3 = inlined_call_operand.vmem [shape: f32[1,128], index: 3, kind: input, shape index: {}]
  %s4 = inlined_call_operand.vmem [shape: bf16[8,128,128], index: 4, kind: input, shape index: {}]
  %s5 = inlined_call_operand.vmem [shape: bf16[128,128], index: 5, kind: input, shape index: {}]
  %s6 = inlined_call_operand.vmem [shape: f32[1,8,128], index: 6, kind: output, shape index: {}]
  %s7 = sld [smem:[#allocation0]]
  $region34: #{face_encoder_forward.1} parent=0
    _
  %s9 = ssub.s32 1, %s7
  %s10 = scalar_select 0, %s9, %s7
  // Predicated region
  $region2: #{face_encoder_forward.1} parent=0 // pred_check
    _
  $region3: #{face_encoder_forward.1} parent=0 // pred_check_branch
    %12 = sbr.rel (0) target = $region5
  $region4: #{face_encoder_forward.1} parent=0 // pred_region
    _
  $region5: #{face_encoder_forward.1} parent=0 // pred_fallthru
    _
  // Predicated region
  $region6: #{face_encoder_forward.1} parent=0 // pred_check
    _
  $region7: #{face_encoder_forward.1} parent=0 // pred_check_branch
    %14 = sbr.rel (0) target = $region9
  $region8: #{face_encoder_forward.1} parent=0 // pred_region
    _
  $region9: #{face_encoder_forward.1} parent=0 // pred_fallthru
    _
  // Predicated region
  $region10: #{face_encoder_forward.1} parent=0 // pred_check
    _
  $region11: #{face_encoder_forward.1} parent=0 // pred_check_branch
    %16 = sbr.rel (0) target = $region13
  $region12: #{face_encoder_forward.1} parent=0 // pred_region
    _
  $region13: #{face_encoder_forward.1} parent=0 // pred_fallthru
    _
  // Predicated region
  $region14: #{face_encoder_forward.1} parent=0 // pred_check
    _
  $region15: #{face_encoder_forward.1} parent=0 // pred_check_branch
    %18 = sbr.rel (0) target = $region17
  $region16: #{face_encoder_forward.1} parent=0 // pred_region
    _
  $region17: #{face_encoder_forward.1} parent=0 // pred_fallthru
    _
  // Predicated region
  $region18: #{face_encoder_forward.1} parent=0 // pred_check
    _
  $region19: #{face_encoder_forward.1} parent=0 // pred_check_branch
    %20 = sbr.rel (0) target = $region21
  $region20: #{face_encoder_forward.1} parent=0 // pred_region
    _
  $region21: #{face_encoder_forward.1} parent=0 // pred_fallthru
    _
  // Predicated region
  $region22: #{face_encoder_forward.1} parent=0 // pred_check
    _
  $region23: #{face_encoder_forward.1} parent=0 // pred_check_branch
    %22 = sbr.rel (0) target = $region25
  $region24: #{face_encoder_forward.1} parent=0 // pred_region
    _
  $region25: #{face_encoder_forward.1} parent=0 // pred_fallthru
    _
  %v24 = vld [vmem:[%s0] sm:$0xff]
  %v25 = vld [vmem:[%s0 + $0x8] sm:$0xff]
  %v26 = vld [vmem:[%s0 + $0x10] sm:$0xff]
  %v27 = vld [vmem:[%s0 + $0x18] sm:$0xff]
  %v28 = vld [vmem:[%s0 + $0x20] sm:$0xff]
  %v29 = vld [vmem:[%s0 + $0x28] sm:$0xff]
  %v30 = vld [vmem:[%s0 + $0x30] sm:$0xff]
  %v31 = vld [vmem:[%s0 + $0x38] sm:$0xff]
  %v32 = vld [vmem:[%s0 + $0x40] sm:$0xff]
  %v33 = vpack.c.bf16 %v25, %v24
  %v34 = vpack.c.bf16 %v26, %v25
  %v35 = vpack.c.bf16 %v27, %v26
  %v36 = vpack.c.bf16 %v28, %v27
  %v37 = vpack.c.bf16 %v29, %v28
  %v38 = vpack.c.bf16 %v30, %v29
  %v39 = vpack.c.bf16 %v31, %v30
  %v40 = vpack.c.bf16 %v32, %v31
  %v41 = vld [vmem:[%s1] sm:$0xff]
  %v42 = vld [vmem:[%s1 + $0x8] sm:$0xff]
  %v43 = vld [vmem:[%s1 + $0x10] sm:$0xff]
  %v44 = vld [vmem:[%s1 + $0x18] sm:$0xff]
  %v45 = vld [vmem:[%s1 + $0x20] sm:$0xff]
  %v46 = vld [vmem:[%s1 + $0x28] sm:$0xff]
  %v47 = vld [vmem:[%s1 + $0x30] sm:$0xff]
  %v48 = vld [vmem:[%s1 + $0x38] sm:$0xff]
  %v49 = vld [vmem:[%s1 + $0x40] sm:$0xff]
  %v50 = vld [vmem:[%s1 + $0x48] sm:$0xff]
  %v51 = vld [vmem:[%s1 + $0x50] sm:$0xff]
  %v52 = vld [vmem:[%s1 + $0x58] sm:$0xff]
  %v53 = vld [vmem:[%s1 + $0x60] sm:$0xff]
  %v54 = vld [vmem:[%s1 + $0x68] sm:$0xff]
  %v55 = vld [vmem:[%s1 + $0x70] sm:$0xff]
  %v56 = vld [vmem:[%s1 + $0x78] sm:$0xff]
  %v57 = vld [vmem:[%s1 + $0x80] sm:$0xff]
  %v58 = vld [vmem:[%s1 + $0x88] sm:$0xff]
  %v59 = vld [vmem:[%s1 + $0x90] sm:$0xff]
  %v60 = vld [vmem:[%s1 + $0x98] sm:$0xff]
  %v61 = vld [vmem:[%s1 + $0xa0] sm:$0xff]
  %v62 = vld [vmem:[%s1 + $0xa8] sm:$0xff]
  %v63 = vld [vmem:[%s1 + $0xb0] sm:$0xff]
  %v64 = vld [vmem:[%s1 + $0xb8] sm:$0xff]
  %v65 = vld [vmem:[%s1 + $0xc0] sm:$0xff]
  %v66 = vld [vmem:[%s1 + $0xc8] sm:$0xff]
  %v67 = vld [vmem:[%s1 + $0xd0] sm:$0xff]
  %v68 = vld [vmem:[%s1 + $0xd8] sm:$0xff]
  %v69 = vld [vmem:[%s1 + $0xe0] sm:$0xff]
  %v70 = vld [vmem:[%s1 + $0xe8] sm:$0xff]
  %v71 = vld [vmem:[%s1 + $0xf0] sm:$0xff]
  %v72 = vld [vmem:[%s1 + $0xf8] sm:$0xff]
  %v105 = vunpack.c.l.b16 %v41
  %v106 = vunpack.c.h.b16 %v41
  %v107 = vunpack.c.l.b16 %v42
  %v108 = vunpack.c.h.b16 %v42
  %v109 = vunpack.c.l.b16 %v43
  %v110 = vunpack.c.h.b16 %v43
  %v111 = vunpack.c.l.b16 %v44
  %v112 = vunpack.c.h.b16 %v44
  %v113 = vunpack.c.l.b16 %v45
  %v114 = vunpack.c.h.b16 %v45
  %v115 = vunpack.c.l.b16 %v46
  %v116 = vunpack.c.h.b16 %v46
  %v117 = vunpack.c.l.b16 %v47
  %v118 = vunpack.c.h.b16 %v47
  %v119 = vunpack.c.l.b16 %v48
  %v120 = vunpack.c.h.b16 %v48
  %v121 = vunpack.c.l.b16 %v49
  %v122 = vunpack.c.h.b16 %v49
  %v123 = vunpack.c.l.b16 %v50
  %v124 = vunpack.c.h.b16 %v50
  %v125 = vunpack.c.l.b16 %v51
  %v126 = vunpack.c.h.b16 %v51
  %v127 = vunpack.c.l.b16 %v52
  %v128 = vunpack.c.h.b16 %v52
  %v129 = vunpack.c.l.b16 %v53
  %v130 = vunpack.c.h.b16 %v53
  %v131 = vunpack.c.l.b16 %v54
  %v132 = vunpack.c.h.b16 %v54
  %v133 = vunpack.c.l.b16 %v55
  %v134 = vunpack.c.h.b16 %v55
  %v135 = vunpack.c.l.b16 %v56
  %v136 = vunpack.c.h.b16 %v56
  %v137 = vunpack.c.l.b16 %v57
  %v138 = vunpack.c.h.b16 %v57
  %v139 = vunpack.c.l.b16 %v58
  %v140 = vunpack.c.h.b16 %v58
  %v141 = vunpack.c.l.b16 %v59
  %v142 = vunpack.c.h.b16 %v59
  %v143 = vunpack.c.l.b16 %v60
  %v144 = vunpack.c.h.b16 %v60
  %v145 = vunpack.c.l.b16 %v61
  %v146 = vunpack.c.h.b16 %v61
  %v147 = vunpack.c.l.b16 %v62
  %v148 = vunpack.c.h.b16 %v62
  %v149 = vunpack.c.l.b16 %v63
  %v150 = vunpack.c.h.b16 %v63
  %v151 = vunpack.c.l.b16 %v64
  %v152 = vunpack.c.h.b16 %v64
  %v153 = vunpack.c.l.b16 %v65
  %v154 = vunpack.c.h.b16 %v65
  %v155 = vunpack.c.l.b16 %v66
  %v156 = vunpack.c.h.b16 %v66
  %v157 = vunpack.c.l.b16 %v67
  %v158 = vunpack.c.h.b16 %v67
  %v159 = vunpack.c.l.b16 %v68
  %v160 = vunpack.c.h.b16 %v68
  %v161 = vunpack.c.l.b16 %v69
  %v162 = vunpack.c.h.b16 %v69
  %v163 = vunpack.c.l.b16 %v70
  %v164 = vunpack.c.h.b16 %v70
  %v165 = vunpack.c.l.b16 %v71
  %v166 = vunpack.c.h.b16 %v71
  %v167 = vunpack.c.l.b16 %v72
  %v168 = vunpack.c.h.b16 %v72
  %v169 = vpack.c.b16 %v107, %v105
  %v170 = vpack.c.b16 %v108, %v106
  %v171 = vpack.c.b16 %v111, %v109
  %v172 = vpack.c.b16 %v112, %v110
  %v173 = vpack.c.b16 %v115, %v113
  %v174 = vpack.c.b16 %v116, %v114
  %v175 = vpack.c.b16 %v119, %v117
  %v176 = vpack.c.b16 %v120, %v118
  %v177 = vpack.c.b16 %v123, %v121
  %v178 = vpack.c.b16 %v124, %v122
  %v179 = vpack.c.b16 %v127, %v125
  %v180 = vpack.c.b16 %v128, %v126
  %v181 = vpack.c.b16 %v131, %v129
  %v182 = vpack.c.b16 %v132, %v130
  %v183 = vpack.c.b16 %v135, %v133
  %v184 = vpack.c.b16 %v136, %v134
  %v185 = vpack.c.b16 %v139, %v137
  %v186 = vpack.c.b16 %v140, %v138
  %v187 = vpack.c.b16 %v143, %v141
  %v188 = vpack.c.b16 %v144, %v142
  %v189 = vpack.c.b16 %v147, %v145
  %v190 = vpack.c.b16 %v148, %v146
  %v191 = vpack.c.b16 %v151, %v149
  %v192 = vpack.c.b16 %v152, %v150
  %v193 = vpack.c.b16 %v155, %v153
  %v194 = vpack.c.b16 %v156, %v154
  %v195 = vpack.c.b16 %v159, %v157
  %v196 = vpack.c.b16 %v160, %v158
  %v197 = vpack.c.b16 %v163, %v161
  %v198 = vpack.c.b16 %v164, %v162
  %v199 = vpack.c.b16 %v167, %v165
  %v200 = vpack.c.b16 %v168, %v166
  %233 = vmatprep.subr.bf16.mxu0 %v170
  %234 = vmatpush1.bf16.msra.mxu0 %v169
  %235 = vmatprep.subr.bf16.mxu0 %v172
  %236 = vmatpush1.bf16.msra.mxu0 %v171
  %237 = vmatprep.subr.bf16.mxu0 %v174
  %238 = vmatpush1.bf16.msra.mxu0 %v173
  %239 = vmatprep.subr.bf16.mxu0 %v176
  %240 = vmatpush1.bf16.msra.mxu0 %v175
  %241 = vmatprep.subr.bf16.mxu0 %v178
  %242 = vmatpush1.bf16.msra.mxu0 %v177
  %243 = vmatprep.subr.bf16.mxu0 %v180
  %244 = vmatpush1.bf16.msra.mxu0 %v179
  %245 = vmatprep.subr.bf16.mxu0 %v182
  %246 = vmatpush1.bf16.msra.mxu0 %v181
  %247 = vmatprep.subr.bf16.mxu0 %v184
  %248 = vmatpush1.bf16.msra.mxu0 %v183
  %249 = vmatprep.subr.bf16.mxu0 %v186
  %250 = vmatpush1.bf16.msra.mxu0 %v185
  %251 = vmatprep.subr.bf16.mxu0 %v188
  %252 = vmatpush1.bf16.msra.mxu0 %v187
  %253 = vmatprep.subr.bf16.mxu0 %v190
  %254 = vmatpush1.bf16.msra.mxu0 %v189
  %255 = vmatprep.subr.bf16.mxu0 %v192
  %256 = vmatpush1.bf16.msra.mxu0 %v191
  %257 = vmatprep.subr.bf16.mxu0 %v194
  %258 = vmatpush1.bf16.msra.mxu0 %v193
  %259 = vmatprep.subr.bf16.mxu0 %v196
  %260 = vmatpush1.bf16.msra.mxu0 %v195
  %261 = vmatprep.subr.bf16.mxu0 %v198
  %262 = vmatpush1.bf16.msra.mxu0 %v197
  %263 = vmatprep.subr.bf16.mxu0 %v200
  %264 = vmatpush1.bf16.msra.mxu0 %v199
  %265 = vmatprep.mubr.bf16.mxu0 %v34
  %266 = vmatmul.mubr.bf16.gmra.mrb[0].mxu0 %v33
  %v267 = vpop.f32.mrb[0].mxu0
  %v268 = vadd.f32 0.0, %v267
  %v269 = vpop.f32.mrb[0].mxu0
  %v270 = vadd.f32 0.0, %v269
  %v271 = vpop.f32.mrb[0].mxu0
  %v272 = vadd.f32 0.0, %v271
  %v273 = vpop.f32.mrb[0].mxu0
  %v274 = vadd.f32 0.0, %v273
  %275 = vmatprep.mubr.bf16.mxu0 %v36
  %276 = vmatmul.mubr.bf16.gmra.mrb[0].mxu0 %v35
  %v277 = vpop.f32.mrb[0].mxu0
  %v278 = vadd.f32 0.0, %v277
  %v279 = vpop.f32.mrb[0].mxu0
  %v280 = vadd.f32 0.0, %v279
  %v281 = vpop.f32.mrb[0].mxu0
  %v282 = vadd.f32 0.0, %v281
  %v283 = vpop.f32.mrb[0].mxu0
  %v284 = vadd.f32 0.0, %v283
  %285 = vmatprep.mubr.bf16.mxu0 %v38
  %286 = vmatmul.mubr.bf16.gmra.mrb[0].mxu0 %v37
  %v287 = vpop.f32.mrb[0].mxu0
  %v288 = vadd.f32 0.0, %v287
  %v289 = vpop.f32.mrb[0].mxu0
  %v290 = vadd.f32 0.0, %v289
  %v291 = vpop.f32.mrb[0].mxu0
  %v292 = vadd.f32 0.0, %v291
  %v293 = vpop.f32.mrb[0].mxu0
  %v294 = vadd.f32 0.0, %v293
  %295 = vmatprep.mubr.bf16.mxu0 %v40
  %296 = vmatmul.mubr.bf16.gmra.mrb[0].mxu0 %v39
  %v297 = vpop.f32.mrb[0].mxu0
  %v298 = vadd.f32 0.0, %v297
  %v299 = vpop.f32.mrb[0].mxu0
  %v300 = vadd.f32 0.0, %v299
  %v301 = vpop.f32.mrb[0].mxu0
  %v302 = vadd.f32 0.0, %v301
  %v303 = vpop.f32.mrb[0].mxu0
  %v304 = vadd.f32 0.0, %v303
  %305 = vdwg.mxu0
  %vm306 = vcmp.ge.f32.partialorder %v268, 0.0
  %vm307 = vcmp.ge.f32.partialorder %v270, 0.0
  %vm308 = vcmp.ge.f32.partialorder %v272, 0.0
  %vm309 = vcmp.ge.f32.partialorder %v274, 0.0
  %vm310 = vcmp.ge.f32.partialorder %v278, 0.0
  %vm311 = vcmp.ge.f32.partialorder %v280, 0.0
  %vm312 = vcmp.ge.f32.partialorder %v282, 0.0
  %vm313 = vcmp.ge.f32.partialorder %v284, 0.0
  %vm314 = vcmp.ge.f32.partialorder %v288, 0.0
  %vm315 = vcmp.ge.f32.partialorder %v290, 0.0
  %vm316 = vcmp.ge.f32.partialorder %v292, 0.0
  %vm317 = vcmp.ge.f32.partialorder %v294, 0.0
  %vm318 = vcmp.ge.f32.partialorder %v298, 0.0
  %vm319 = vcmp.ge.f32.partialorder %v300, 0.0
  %vm320 = vcmp.ge.f32.partialorder %v302, 0.0
  %vm321 = vcmp.ge.f32.partialorder %v304, 0.0
  %v322 = vmul.f32 %v268, 0.02
  %v323 = vmul.f32 %v270, 0.02
  %v324 = vmul.f32 %v272, 0.02
  %v325 = vmul.f32 %v274, 0.02
  %v326 = vmul.f32 %v278, 0.02
  %v327 = vmul.f32 %v280, 0.02
  %v328 = vmul.f32 %v282, 0.02
  %v329 = vmul.f32 %v284, 0.02
  %v330 = vmul.f32 %v288, 0.02
  %v331 = vmul.f32 %v290, 0.02
  %v332 = vmul.f32 %v292, 0.02
  %v333 = vmul.f32 %v294, 0.02
  %v334 = vmul.f32 %v298, 0.02
  %v335 = vmul.f32 %v300, 0.02
  %v336 = vmul.f32 %v302, 0.02
  %v337 = vmul.f32 %v304, 0.02
  %v338 = vsel %vm306, %v268, %v322
  %v339 = vsel %vm307, %v270, %v323
  %v340 = vsel %vm308, %v272, %v324
  %v341 = vsel %vm309, %v274, %v325
  %v342 = vsel %vm310, %v278, %v326
  %v343 = vsel %vm311, %v280, %v327
  %v344 = vsel %vm312, %v282, %v328
  %v345 = vsel %vm313, %v284, %v329
  %v346 = vsel %vm314, %v288, %v330
  %v347 = vsel %vm315, %v290, %v331
  %v348 = vsel %vm316, %v292, %v332
  %v349 = vsel %vm317, %v294, %v333
  %v350 = vsel %vm318, %v298, %v334
  %v351 = vsel %vm319, %v300, %v335
  %v352 = vsel %vm320, %v302, %v336
  %v353 = vsel %vm321, %v304, %v337
  %v354 = vpack.c.bf16 %v339, 0.0
  %v355 = vpack.c.bf16 %v340, %v338
  %v356 = vpack.c.bf16 %v343, %v341
  %v357 = vpack.c.bf16 %v344, %v342
  %v358 = vpack.c.bf16 %v347, %v345
  %v359 = vpack.c.bf16 %v348, %v346
  %v360 = vpack.c.bf16 %v351, %v349
  %v361 = vpack.c.bf16 %v352, %v350
  %v362 = vpack.c.bf16 %v341, %v339
  %v363 = vpack.c.bf16 %v342, %v340
  %v364 = vpack.c.bf16 %v345, %v343
  %v365 = vpack.c.bf16 %v346, %v344
  %v366 = vpack.c.bf16 %v349, %v347
  %v367 = vpack.c.bf16 %v350, %v348
  %v368 = vpack.c.bf16 %v353, %v351
  %v369 = vpack.c.bf16 0.0, %v352
  %v370 = vld [vmem:[%s2] sm:$0xf]
  %v371 = vld [vmem:[%s2 + $0x4] sm:$0xf]
  %v372 = vld [vmem:[%s2 + $0x8] sm:$0xf]
  %v373 = vld [vmem:[%s2 + $0xc] sm:$0xf]
  %v374 = vld [vmem:[%s2 + $0x10] sm:$0xf]
  %v375 = vld [vmem:[%s2 + $0x14] sm:$0xf]
  %v376 = vld [vmem:[%s2 + $0x18] sm:$0xf]
  %v377 = vld [vmem:[%s2 + $0x1c] sm:$0xf]
  %v378 = vld [vmem:[%s2 + $0x20] sm:$0xf]
  %v379 = vld [vmem:[%s2 + $0x24] sm:$0xf]
  %v380 = vld [vmem:[%s2 + $0x28] sm:$0xf]
  %v381 = vld [vmem:[%s2 + $0x2c] sm:$0xf]
  %v382 = vld [vmem:[%s2 + $0x30] sm:$0xf]
  %v383 = vld [vmem:[%s2 + $0x34] sm:$0xf]
  %v384 = vld [vmem:[%s2 + $0x38] sm:$0xf]
  %v385 = vld [vmem:[%s2 + $0x3c] sm:$0xf]
  %v386 = vld [vmem:[%s2 + $0x40] sm:$0xf]
  %v387 = vld [vmem:[%s2 + $0x44] sm:$0xf]
  %v388 = vld [vmem:[%s2 + $0x48] sm:$0xf]
  %v389 = vld [vmem:[%s2 + $0x4c] sm:$0xf]
  %v390 = vld [vmem:[%s2 + $0x50] sm:$0xf]
  %v391 = vld [vmem:[%s2 + $0x54] sm:$0xf]
  %v392 = vld [vmem:[%s2 + $0x58] sm:$0xf]
  %v393 = vld [vmem:[%s2 + $0x5c] sm:$0xf]
  %v394 = vld [vmem:[%s2 + $0x60] sm:$0xf]
  %v395 = vld [vmem:[%s2 + $0x64] sm:$0xf]
  %v396 = vld [vmem:[%s2 + $0x68] sm:$0xf]
  %v397 = vld [vmem:[%s2 + $0x6c] sm:$0xf]
  %v398 = vld [vmem:[%s2 + $0x70] sm:$0xf]
  %v399 = vld [vmem:[%s2 + $0x74] sm:$0xf]
  %v400 = vld [vmem:[%s2 + $0x78] sm:$0xf]
  %v401 = vld [vmem:[%s2 + $0x7c] sm:$0xf]
  %v402 = vld [vmem:[%s2 + $0x80] sm:$0xf]
  %v403 = vld [vmem:[%s2 + $0x84] sm:$0xf]
  %v404 = vld [vmem:[%s2 + $0x88] sm:$0xf]
  %v405 = vld [vmem:[%s2 + $0x8c] sm:$0xf]
  %v406 = vld [vmem:[%s2 + $0x90] sm:$0xf]
  %v407 = vld [vmem:[%s2 + $0x94] sm:$0xf]
  %v408 = vld [vmem:[%s2 + $0x98] sm:$0xf]
  %v409 = vld [vmem:[%s2 + $0x9c] sm:$0xf]
  %v410 = vld [vmem:[%s2 + $0xa0] sm:$0xf]
  %v411 = vld [vmem:[%s2 + $0xa4] sm:$0xf]
  %v412 = vld [vmem:[%s2 + $0xa8] sm:$0xf]
  %v413 = vld [vmem:[%s2 + $0xac] sm:$0xf]
  %v414 = vld [vmem:[%s2 + $0xb0] sm:$0xf]
  %v415 = vld [vmem:[%s2 + $0xb4] sm:$0xf]
  %v416 = vld [vmem:[%s2 + $0xb8] sm:$0xf]
  %v417 = vld [vmem:[%s2 + $0xbc] sm:$0xf]
  %v418 = vld [vmem:[%s2 + $0xc0] sm:$0xf]
  %v419 = vld [vmem:[%s2 + $0xc4] sm:$0xf]
  %v420 = vld [vmem:[%s2 + $0xc8] sm:$0xf]
  %v421 = vld [vmem:[%s2 + $0xcc] sm:$0xf]
  %v422 = vld [vmem:[%s2 + $0xd0] sm:$0xf]
  %v423 = vld [vmem:[%s2 + $0xd4] sm:$0xf]
  %v424 = vld [vmem:[%s2 + $0xd8] sm:$0xf]
  %v425 = vld [vmem:[%s2 + $0xdc] sm:$0xf]
  %v426 = vld [vmem:[%s2 + $0xe0] sm:$0xf]
  %v427 = vld [vmem:[%s2 + $0xe4] sm:$0xf]
  %v428 = vld [vmem:[%s2 + $0xe8] sm:$0xf]
  %v429 = vld [vmem:[%s2 + $0xec] sm:$0xf]
  %v430 = vld [vmem:[%s2 + $0xf0] sm:$0xf]
  %v431 = vld [vmem:[%s2 + $0xf4] sm:$0xf]
  %v432 = vld [vmem:[%s2 + $0xf8] sm:$0xf]
  %v433 = vld [vmem:[%s2 + $0xfc] sm:$0xf]
  %v466 = vunpack.c.l.b16 %v402
  %v467 = vunpack.c.l.b16 %v403
  %v468 = vunpack.c.l.b16 %v404
  %v469 = vunpack.c.l.b16 %v405
  %v470 = vunpack.c.l.b16 %v406
  %v471 = vunpack.c.l.b16 %v407
  %v472 = vunpack.c.l.b16 %v408
  %v473 = vunpack.c.l.b16 %v409
  %v474 = vunpack.c.l.b16 %v410
  %v475 = vunpack.c.l.b16 %v411
  %v476 = vunpack.c.l.b16 %v412
  %v477 = vunpack.c.l.b16 %v413
  %v478 = vunpack.c.l.b16 %v414
  %v479 = vunpack.c.l.b16 %v415
  %v480 = vunpack.c.l.b16 %v416
  %v481 = vunpack.c.l.b16 %v417
  %v482 = vunpack.c.l.b16 %v418
  %v483 = vunpack.c.l.b16 %v419
  %v484 = vunpack.c.l.b16 %v420
  %v485 = vunpack.c.l.b16 %v421
  %v486 = vunpack.c.l.b16 %v422
  %v487 = vunpack.c.l.b16 %v423
  %v488 = vunpack.c.l.b16 %v424
  %v489 = vunpack.c.l.b16 %v425
  %v490 = vunpack.c.l.b16 %v426
  %v491 = vunpack.c.l.b16 %v427
  %v492 = vunpack.c.l.b16 %v428
  %v493 = vunpack.c.l.b16 %v429
  %v494 = vunpack.c.l.b16 %v430
  %v495 = vunpack.c.l.b16 %v431
  %v496 = vunpack.c.l.b16 %v432
  %v497 = vunpack.c.l.b16 %v433
  %v498 = vpack.c.b16 %v467, %v466
  %v499 = vpack.c.b16 %v469, %v468
  %v500 = vpack.c.b16 %v471, %v470
  %v501 = vpack.c.b16 %v473, %v472
  %v502 = vpack.c.b16 %v475, %v474
  %v503 = vpack.c.b16 %v477, %v476
  %v504 = vpack.c.b16 %v479, %v478
  %v505 = vpack.c.b16 %v481, %v480
  %v506 = vpack.c.b16 %v483, %v482
  %v507 = vpack.c.b16 %v485, %v484
  %v508 = vpack.c.b16 %v487, %v486
  %v509 = vpack.c.b16 %v489, %v488
  %v510 = vpack.c.b16 %v491, %v490
  %v511 = vpack.c.b16 %v493, %v492
  %v512 = vpack.c.b16 %v495, %v494
  %v513 = vpack.c.b16 %v497, %v496
  %530 = vmatprep.subr.bf16.mxu0 0
  %531 = vmatpush1.bf16.msra.mxu0 %v498
  %532 = vmatprep.subr.bf16.mxu0 0
  %533 = vmatpush1.bf16.msra.mxu0 %v499
  %534 = vmatprep.subr.bf16.mxu0 0
  %535 = vmatpush1.bf16.msra.mxu0 %v500
  %536 = vmatprep.subr.bf16.mxu0 0
  %537 = vmatpush1.bf16.msra.mxu0 %v501
  %538 = vmatprep.subr.bf16.mxu0 0
  %539 = vmatpush1.bf16.msra.mxu0 %v502
  %540 = vmatprep.subr.bf16.mxu0 0
  %541 = vmatpush1.bf16.msra.mxu0 %v503
  %542 = vmatprep.subr.bf16.mxu0 0
  %543 = vmatpush1.bf16.msra.mxu0 %v504
  %544 = vmatprep.subr.bf16.mxu0 0
  %545 = vmatpush1.bf16.msra.mxu0 %v505
  %546 = vmatprep.subr.bf16.mxu0 0
  %547 = vmatpush1.bf16.msra.mxu0 %v506
  %548 = vmatprep.subr.bf16.mxu0 0
  %549 = vmatpush1.bf16.msra.mxu0 %v507
  %550 = vmatprep.subr.bf16.mxu0 0
  %551 = vmatpush1.bf16.msra.mxu0 %v508
  %552 = vmatprep.subr.bf16.mxu0 0
  %553 = vmatpush1.bf16.msra.mxu0 %v509
  %554 = vmatprep.subr.bf16.mxu0 0
  %555 = vmatpush1.bf16.msra.mxu0 %v510
  %556 = vmatprep.subr.bf16.mxu0 0
  %557 = vmatpush1.bf16.msra.mxu0 %v511
  %558 = vmatprep.subr.bf16.mxu0 0
  %559 = vmatpush1.bf16.msra.mxu0 %v512
  %560 = vmatprep.subr.bf16.mxu0 0
  %561 = vmatpush1.bf16.msra.mxu0 %v513
  %562 = vmatprep.mubr.bf16.mxu0 %v363
  %563 = vmatmul.mubr.bf16.gmra.mrb[0].mxu0 %v362
  %v564 = vpop.f32.mrb[0].mxu0
  %v565 = vadd.f32 0.0, %v564
  %v566 = vpop.f32.mrb[0].mxu0
  %v567 = vpop.f32.mrb[0].mxu0
  %v568 = vadd.f32 0.0, %v567
  %v569 = vpop.f32.mrb[0].mxu0
  %570 = vmatprep.mubr.bf16.mxu0 %v365
  %571 = vmatmul.mubr.bf16.gmra.mrb[0].mxu0 %v364
  %v572 = vpop.f32.mrb[0].mxu0
  %v573 = vadd.f32 0.0, %v572
  %v574 = vpop.f32.mrb[0].mxu0
  %v575 = vpop.f32.mrb[0].mxu0
  %v576 = vadd.f32 0.0, %v575
  %v577 = vpop.f32.mrb[0].mxu0
  %578 = vmatprep.mubr.bf16.mxu0 %v367
  %579 = vmatmul.mubr.bf16.gmra.mrb[0].mxu0 %v366
  %v580 = vpop.f32.mrb[0].mxu0
  %v581 = vadd.f32 0.0, %v580
  %v582 = vpop.f32.mrb[0].mxu0
  %v583 = vpop.f32.mrb[0].mxu0
  %v584 = vadd.f32 0.0, %v583
  %v585 = vpop.f32.mrb[0].mxu0
  %586 = vmatprep.mubr.bf16.mxu0 %v369
  %587 = vmatmul.mubr.bf16.gmra.mrb[0].mxu0 %v368
  %v588 = vpop.f32.mrb[0].mxu0
  %v589 = vadd.f32 0.0, %v588
  %v590 = vpop.f32.mrb[0].mxu0
  %v591 = vpop.f32.mrb[0].mxu0
  %v592 = vadd.f32 0.0, %v591
  %v593 = vpop.f32.mrb[0].mxu0
  %594 = vdwg.mxu0
  %v627 = vunpack.c.l.b16 %v370
  %v628 = vunpack.c.l.b16 %v371
  %v629 = vunpack.c.l.b16 %v372
  %v630 = vunpack.c.l.b16 %v373
  %v631 = vunpack.c.l.b16 %v374
  %v632 = vunpack.c.l.b16 %v375
  %v633 = vunpack.c.l.b16 %v376
  %v634 = vunpack.c.l.b16 %v377
  %v635 = vunpack.c.l.b16 %v378
  %v636 = vunpack.c.l.b16 %v379
  %v637 = vunpack.c.l.b16 %v380
  %v638 = vunpack.c.l.b16 %v381
  %v639 = vunpack.c.l.b16 %v382
  %v640 = vunpack.c.l.b16 %v383
  %v641 = vunpack.c.l.b16 %v384
  %v642 = vunpack.c.l.b16 %v385
  %v643 = vunpack.c.l.b16 %v386
  %v644 = vunpack.c.l.b16 %v387
  %v645 = vunpack.c.l.b16 %v388
  %v646 = vunpack.c.l.b16 %v389
  %v647 = vunpack.c.l.b16 %v390
  %v648 = vunpack.c.l.b16 %v391
  %v649 = vunpack.c.l.b16 %v392
  %v650 = vunpack.c.l.b16 %v393
  %v651 = vunpack.c.l.b16 %v394
  %v652 = vunpack.c.l.b16 %v395
  %v653 = vunpack.c.l.b16 %v396
  %v654 = vunpack.c.l.b16 %v397
  %v655 = vunpack.c.l.b16 %v398
  %v656 = vunpack.c.l.b16 %v399
  %v657 = vunpack.c.l.b16 %v400
  %v658 = vunpack.c.l.b16 %v401
  %v659 = vpack.c.b16 %v628, %v627
  %v660 = vpack.c.b16 %v630, %v629
  %v661 = vpack.c.b16 %v632, %v631
  %v662 = vpack.c.b16 %v634, %v633
  %v663 = vpack.c.b16 %v636, %v635
  %v664 = vpack.c.b16 %v638, %v637
  %v665 = vpack.c.b16 %v640, %v639
  %v666 = vpack.c.b16 %v642, %v641
  %v667 = vpack.c.b16 %v644, %v643
  %v668 = vpack.c.b16 %v646, %v645
  %v669 = vpack.c.b16 %v648, %v647
  %v670 = vpack.c.b16 %v650, %v649
  %v671 = vpack.c.b16 %v652, %v651
  %v672 = vpack.c.b16 %v654, %v653
  %v673 = vpack.c.b16 %v656, %v655
  %v674 = vpack.c.b16 %v658, %v657
  %691 = vmatprep.subr.bf16.mxu0 0
  %692 = vmatpush1.bf16.msra.mxu0 %v659
  %693 = vmatprep.subr.bf16.mxu0 0
  %694 = vmatpush1.bf16.msra.mxu0 %v660
  %695 = vmatprep.subr.bf16.mxu0 0
  %696 = vmatpush1.bf16.msra.mxu0 %v661
  %697 = vmatprep.subr.bf16.mxu0 0
  %698 = vmatpush1.bf16.msra.mxu0 %v662
  %699 = vmatprep.subr.bf16.mxu0 0
  %700 = vmatpush1.bf16.msra.mxu0 %v663
  %701 = vmatprep.subr.bf16.mxu0 0
  %702 = vmatpush1.bf16.msra.mxu0 %v664
  %703 = vmatprep.subr.bf16.mxu0 0
  %704 = vmatpush1.bf16.msra.mxu0 %v665
  %705 = vmatprep.subr.bf16.mxu0 0
  %706 = vmatpush1.bf16.msra.mxu0 %v666
  %707 = vmatprep.subr.bf16.mxu0 0
  %708 = vmatpush1.bf16.msra.mxu0 %v667
  %709 = vmatprep.subr.bf16.mxu0 0
  %710 = vmatpush1.bf16.msra.mxu0 %v668
  %711 = vmatprep.subr.bf16.mxu0 0
  %712 = vmatpush1.bf16.msra.mxu0 %v669
  %713 = vmatprep.subr.bf16.mxu0 0
  %714 = vmatpush1.bf16.msra.mxu0 %v670
  %715 = vmatprep.subr.bf16.mxu0 0
  %716 = vmatpush1.bf16.msra.mxu0 %v671
  %717 = vmatprep.subr.bf16.mxu0 0
  %718 = vmatpush1.bf16.msra.mxu0 %v672
  %719 = vmatprep.subr.bf16.mxu0 0
  %720 = vmatpush1.bf16.msra.mxu0 %v673
  %721 = vmatprep.subr.bf16.mxu0 0
  %722 = vmatpush1.bf16.msra.mxu0 %v674
  %723 = vmatprep.mubr.bf16.mxu0 %v355
  %724 = vmatmul.mubr.bf16.gmra.mrb[0].mxu0 %v354
  %v725 = vpop.f32.mrb[0].mxu0
  %v726 = vadd.f32 %v565, %v725
  %v727 = vpop.f32.mrb[0].mxu0
  %v728 = vpop.f32.mrb[0].mxu0
  %v729 = vadd.f32 %v568, %v728
  %v730 = vpop.f32.mrb[0].mxu0
  %731 = vmatprep.mubr.bf16.mxu0 %v357
  %732 = vmatmul.mubr.bf16.gmra.mrb[0].mxu0 %v356
  %v733 = vpop.f32.mrb[0].mxu0
  %v734 = vadd.f32 %v573, %v733
  %v735 = vpop.f32.mrb[0].mxu0
  %v736 = vpop.f32.mrb[0].mxu0
  %v737 = vadd.f32 %v576, %v736
  %v738 = vpop.f32.mrb[0].mxu0
  %739 = vmatprep.mubr.bf16.mxu0 %v359
  %740 = vmatmul.mubr.bf16.gmra.mrb[0].mxu0 %v358
  %v741 = vpop.f32.mrb[0].mxu0
  %v742 = vadd.f32 %v581, %v741
  %v743 = vpop.f32.mrb[0].mxu0
  %v744 = vpop.f32.mrb[0].mxu0
  %v745 = vadd.f32 %v584, %v744
  %v746 = vpop.f32.mrb[0].mxu0
  %747 = vmatprep.mubr.bf16.mxu0 %v361
  %748 = vmatmul.mubr.bf16.gmra.mrb[0].mxu0 %v360
  %v749 = vpop.f32.mrb[0].mxu0
  %v750 = vadd.f32 %v589, %v749
  %v751 = vpop.f32.mrb[0].mxu0
  %v752 = vpop.f32.mrb[0].mxu0
  %v753 = vadd.f32 %v592, %v752
  %v754 = vpop.f32.mrb[0].mxu0
  %755 = vdwg.mxu0
  %v756 = vld [vmem:[%s3] sm:$0x1]
  %v758 = vlaneseq
  %v759 = vshrl.u32 %v758, 7
  %v760 = vsub.s32 0, %v759
  %v761 = vrot.slane %v756, %v760
  %v763 = vadd.f32 %v726, %v761
  %v764 = vadd.f32 %v729, %v761
  %v765 = vadd.f32 %v734, %v761
  %v766 = vadd.f32 %v737, %v761
  %v767 = vadd.f32 %v742, %v761
  %v768 = vadd.f32 %v745, %v761
  %v769 = vadd.f32 %v750, %v761
  %v770 = vadd.f32 %v753, %v761
  %vm771 = vcmp.ge.f32.partialorder %v763, 0.0
  %vm772 = vcmp.ge.f32.partialorder %v764, 0.0
  %vm773 = vcmp.ge.f32.partialorder %v765, 0.0
  %vm774 = vcmp.ge.f32.partialorder %v766, 0.0
  %vm775 = vcmp.ge.f32.partialorder %v767, 0.0
  %vm776 = vcmp.ge.f32.partialorder %v768, 0.0
  %vm777 = vcmp.ge.f32.partialorder %v769, 0.0
  %vm778 = vcmp.ge.f32.partialorder %v770, 0.0
  %v779 = vmul.f32 %v763, 0.02
  %v780 = vmul.f32 %v764, 0.02
  %v781 = vmul.f32 %v765, 0.02
  %v782 = vmul.f32 %v766, 0.02
  %v783 = vmul.f32 %v767, 0.02
  %v784 = vmul.f32 %v768, 0.02
  %v785 = vmul.f32 %v769, 0.02
  %v786 = vmul.f32 %v770, 0.02
  %v787 = vsel %vm771, %v763, %v779
  %v788 = vsel %vm772, %v764, %v780
  %v789 = vsel %vm773, %v765, %v781
  %v790 = vsel %vm774, %v766, %v782
  %v791 = vsel %vm775, %v767, %v783
  %v792 = vsel %vm776, %v768, %v784
  %v793 = vsel %vm777, %v769, %v785
  %v794 = vsel %vm778, %v770, %v786
  %v795 = vpack.c.bf16 %v787, %v787
  %v796 = vld [vmem:[%s4] sm:$0xf]
  %v797 = vld [vmem:[%s4 + $0x4] sm:$0xf]
  %v798 = vld [vmem:[%s4 + $0x8] sm:$0xf]
  %v799 = vld [vmem:[%s4 + $0xc] sm:$0xf]
  %v800 = vld [vmem:[%s4 + $0x10] sm:$0xf]
  %v801 = vld [vmem:[%s4 + $0x14] sm:$0xf]
  %v802 = vld [vmem:[%s4 + $0x18] sm:$0xf]
  %v803 = vld [vmem:[%s4 + $0x1c] sm:$0xf]
  %v804 = vld [vmem:[%s4 + $0x20] sm:$0xf]
  %v805 = vld [vmem:[%s4 + $0x24] sm:$0xf]
  %v806 = vld [vmem:[%s4 + $0x28] sm:$0xf]
  %v807 = vld [vmem:[%s4 + $0x2c] sm:$0xf]
  %v808 = vld [vmem:[%s4 + $0x30] sm:$0xf]
  %v809 = vld [vmem:[%s4 + $0x34] sm:$0xf]
  %v810 = vld [vmem:[%s4 + $0x38] sm:$0xf]
  %v811 = vld [vmem:[%s4 + $0x3c] sm:$0xf]
  %v812 = vpack.c.bf16 %v788, %v788
  %s813 = scalar_lea.vmem %s4, 64
  %v814 = vld [vmem:[%s813] sm:$0xf]
  %v815 = vld [vmem:[%s813 + $0x4] sm:$0xf]
  %v816 = vld [vmem:[%s813 + $0x8] sm:$0xf]
  %v817 = vld [vmem:[%s813 + $0xc] sm:$0xf]
  %v818 = vld [vmem:[%s813 + $0x10] sm:$0xf]
  %v819 = vld [vmem:[%s813 + $0x14] sm:$0xf]
  %v820 = vld [vmem:[%s813 + $0x18] sm:$0xf]
  %v821 = vld [vmem:[%s813 + $0x1c] sm:$0xf]
  %v822 = vld [vmem:[%s813 + $0x20] sm:$0xf]
  %v823 = vld [vmem:[%s813 + $0x24] sm:$0xf]
  %v824 = vld [vmem:[%s813 + $0x28] sm:$0xf]
  %v825 = vld [vmem:[%s813 + $0x2c] sm:$0xf]
  %v826 = vld [vmem:[%s813 + $0x30] sm:$0xf]
  %v827 = vld [vmem:[%s813 + $0x34] sm:$0xf]
  %v828 = vld [vmem:[%s813 + $0x38] sm:$0xf]
  %v829 = vld [vmem:[%s813 + $0x3c] sm:$0xf]
  %v846 = vunpack.c.l.b16 %v814
  %v847 = vunpack.c.l.b16 %v815
  %v848 = vunpack.c.l.b16 %v816
  %v849 = vunpack.c.l.b16 %v817
  %v850 = vunpack.c.l.b16 %v818
  %v851 = vunpack.c.l.b16 %v819
  %v852 = vunpack.c.l.b16 %v820
  %v853 = vunpack.c.l.b16 %v821
  %v854 = vunpack.c.l.b16 %v822
  %v855 = vunpack.c.l.b16 %v823
  %v856 = vunpack.c.l.b16 %v824
  %v857 = vunpack.c.l.b16 %v825
  %v858 = vunpack.c.l.b16 %v826
  %v859 = vunpack.c.l.b16 %v827
  %v860 = vunpack.c.l.b16 %v828
  %v861 = vunpack.c.l.b16 %v829
  %v862 = vpack.c.b16 %v847, %v846
  %v863 = vpack.c.b16 %v849, %v848
  %v864 = vpack.c.b16 %v851, %v850
  %v865 = vpack.c.b16 %v853, %v852
  %v866 = vpack.c.b16 %v855, %v854
  %v867 = vpack.c.b16 %v857, %v856
  %v868 = vpack.c.b16 %v859, %v858
  %v869 = vpack.c.b16 %v861, %v860
  %878 = vmatprep.subr.bf16.mxu0 0
  %879 = vmatpush1.bf16.msra.mxu0 %v862
  %880 = vmatprep.subr.bf16.mxu0 0
  %881 = vmatpush1.bf16.msra.mxu0 %v863
  %882 = vmatprep.subr.bf16.mxu0 0
  %883 = vmatpush1.bf16.msra.mxu0 %v864
  %884 = vmatprep.subr.bf16.mxu0 0
  %885 = vmatpush1.bf16.msra.mxu0 %v865
  %886 = vmatprep.subr.bf16.mxu0 0
  %887 = vmatpush1.bf16.msra.mxu0 %v866
  %888 = vmatprep.subr.bf16.mxu0 0
  %889 = vmatpush1.bf16.msra.mxu0 %v867
  %890 = vmatprep.subr.bf16.mxu0 0
  %891 = vmatpush1.bf16.msra.mxu0 %v868
  %892 = vmatprep.subr.bf16.mxu0 0
  %893 = vmatpush1.bf16.msra.mxu0 %v869
  %894 = vmatprep.subr.bf16.mxu0 0
  %895 = vmatpush1.bf16.msra.mxu0 0
  %896 = vmatprep.subr.bf16.mxu0 0
  %897 = vmatpush1.bf16.msra.mxu0 0
  %898 = vmatprep.subr.bf16.mxu0 0
  %899 = vmatpush1.bf16.msra.mxu0 0
  %900 = vmatprep.subr.bf16.mxu0 0
  %901 = vmatpush1.bf16.msra.mxu0 0
  %902 = vmatprep.subr.bf16.mxu0 0
  %903 = vmatpush1.bf16.msra.mxu0 0
  %904 = vmatprep.subr.bf16.mxu0 0
  %905 = vmatpush1.bf16.msra.mxu0 0
  %906 = vmatprep.subr.bf16.mxu0 0
  %907 = vmatpush1.bf16.msra.mxu0 0
  %908 = vmatprep.subr.bf16.mxu0 0
  %909 = vmatpush1.bf16.msra.mxu0 0
  %910 = vmatprep.mubr.bf16.mxu0 0
  %911 = vmatmul.mubr.bf16.gmra.mrb[0].mxu0 %v812
  %v912 = vpop.f32.mrb[0].mxu0
  %v913 = vadd.f32 0.0, %v912
  %v914 = vpop.f32.mrb[0].mxu0
  %v915 = vpop.f32.mrb[0].mxu0
  %v916 = vpop.f32.mrb[0].mxu0
  %917 = vdwg.mxu0
  %v934 = vunpack.c.l.b16 %v796
  %v935 = vunpack.c.l.b16 %v797
  %v936 = vunpack.c.l.b16 %v798
  %v937 = vunpack.c.l.b16 %v799
  %v938 = vunpack.c.l.b16 %v800
  %v939 = vunpack.c.l.b16 %v801
  %v940 = vunpack.c.l.b16 %v802
  %v941 = vunpack.c.l.b16 %v803
  %v942 = vunpack.c.l.b16 %v804
  %v943 = vunpack.c.l.b16 %v805
  %v944 = vunpack.c.l.b16 %v806
  %v945 = vunpack.c.l.b16 %v807
  %v946 = vunpack.c.l.b16 %v808
  %v947 = vunpack.c.l.b16 %v809
  %v948 = vunpack.c.l.b16 %v810
  %v949 = vunpack.c.l.b16 %v811
  %v950 = vpack.c.b16 %v935, %v934
  %v951 = vpack.c.b16 %v937, %v936
  %v952 = vpack.c.b16 %v939, %v938
  %v953 = vpack.c.b16 %v941, %v940
  %v954 = vpack.c.b16 %v943, %v942
  %v955 = vpack.c.b16 %v945, %v944
  %v956 = vpack.c.b16 %v947, %v946
  %v957 = vpack.c.b16 %v949, %v948
  %966 = vmatprep.subr.bf16.mxu0 0
  %967 = vmatpush1.bf16.msra.mxu0 %v950
  %968 = vmatprep.subr.bf16.mxu0 0
  %969 = vmatpush1.bf16.msra.mxu0 %v951
  %970 = vmatprep.subr.bf16.mxu0 0
  %971 = vmatpush1.bf16.msra.mxu0 %v952
  %972 = vmatprep.subr.bf16.mxu0 0
  %973 = vmatpush1.bf16.msra.mxu0 %v953
  %974 = vmatprep.subr.bf16.mxu0 0
  %975 = vmatpush1.bf16.msra.mxu0 %v954
  %976 = vmatprep.subr.bf16.mxu0 0
  %977 = vmatpush1.bf16.msra.mxu0 %v955
  %978 = vmatprep.subr.bf16.mxu0 0
  %979 = vmatpush1.bf16.msra.mxu0 %v956
  %980 = vmatprep.subr.bf16.mxu0 0
  %981 = vmatpush1.bf16.msra.mxu0 %v957
  %982 = vmatprep.subr.bf16.mxu0 0
  %983 = vmatpush1.bf16.msra.mxu0 0
  %984 = vmatprep.subr.bf16.mxu0 0
  %985 = vmatpush1.bf16.msra.mxu0 0
  %986 = vmatprep.subr.bf16.mxu0 0
  %987 = vmatpush1.bf16.msra.mxu0 0
  %988 = vmatprep.subr.bf16.mxu0 0
  %989 = vmatpush1.bf16.msra.mxu0 0
  %990 = vmatprep.subr.bf16.mxu0 0
  %991 = vmatpush1.bf16.msra.mxu0 0
  %992 = vmatprep.subr.bf16.mxu0 0
  %993 = vmatpush1.bf16.msra.mxu0 0
  %994 = vmatprep.subr.bf16.mxu0 0
  %995 = vmatpush1.bf16.msra.mxu0 0
  %996 = vmatprep.subr.bf16.mxu0 0
  %997 = vmatpush1.bf16.msra.mxu0 0
  %998 = vmatprep.mubr.bf16.mxu0 0
  %999 = vmatmul.mubr.bf16.gmra.mrb[0].mxu0 %v795
  %v1000 = vpop.f32.mrb[0].mxu0
  %v1001 = vadd.f32 %v913, %v1000
  %v1002 = vpop.f32.mrb[0].mxu0
  %v1003 = vpop.f32.mrb[0].mxu0
  %v1004 = vpop.f32.mrb[0].mxu0
  %1005 = vdwg.mxu0
  %v1006 = vpack.c.bf16 %v789, %v789
  %s1007 = scalar_lea.vmem %s4, 128
  %v1008 = vld [vmem:[%s1007] sm:$0xf]
  %v1009 = vld [vmem:[%s1007 + $0x4] sm:$0xf]
  %v1010 = vld [vmem:[%s1007 + $0x8] sm:$0xf]
  %v1011 = vld [vmem:[%s1007 + $0xc] sm:$0xf]
  %v1012 = vld [vmem:[%s1007 + $0x10] sm:$0xf]
  %v1013 = vld [vmem:[%s1007 + $0x14] sm:$0xf]
  %v1014 = vld [vmem:[%s1007 + $0x18] sm:$0xf]
  %v1015 = vld [vmem:[%s1007 + $0x1c] sm:$0xf]
  %v1016 = vld [vmem:[%s1007 + $0x20] sm:$0xf]
  %v1017 = vld [vmem:[%s1007 + $0x24] sm:$0xf]
  %v1018 = vld [vmem:[%s1007 + $0x28] sm:$0xf]
  %v1019 = vld [vmem:[%s1007 + $0x2c] sm:$0xf]
  %v1020 = vld [vmem:[%s1007 + $0x30] sm:$0xf]
  %v1021 = vld [vmem:[%s1007 + $0x34] sm:$0xf]
  %v1022 = vld [vmem:[%s1007 + $0x38] sm:$0xf]
  %v1023 = vld [vmem:[%s1007 + $0x3c] sm:$0xf]
  %v1040 = vunpack.c.l.b16 %v1008
  %v1041 = vunpack.c.l.b16 %v1009
  %v1042 = vunpack.c.l.b16 %v1010
  %v1043 = vunpack.c.l.b16 %v1011
  %v1044 = vunpack.c.l.b16 %v1012
  %v1045 = vunpack.c.l.b16 %v1013
  %v1046 = vunpack.c.l.b16 %v1014
  %v1047 = vunpack.c.l.b16 %v1015
  %v1048 = vunpack.c.l.b16 %v1016
  %v1049 = vunpack.c.l.b16 %v1017
  %v1050 = vunpack.c.l.b16 %v1018
  %v1051 = vunpack.c.l.b16 %v1019
  %v1052 = vunpack.c.l.b16 %v1020
  %v1053 = vunpack.c.l.b16 %v1021
  %v1054 = vunpack.c.l.b16 %v1022
  %v1055 = vunpack.c.l.b16 %v1023
  %v1056 = vpack.c.b16 %v1041, %v1040
  %v1057 = vpack.c.b16 %v1043, %v1042
  %v1058 = vpack.c.b16 %v1045, %v1044
  %v1059 = vpack.c.b16 %v1047, %v1046
  %v1060 = vpack.c.b16 %v1049, %v1048
  %v1061 = vpack.c.b16 %v1051, %v1050
  %v1062 = vpack.c.b16 %v1053, %v1052
  %v1063 = vpack.c.b16 %v1055, %v1054
  %1072 = vmatprep.subr.bf16.mxu0 0
  %1073 = vmatpush1.bf16.msra.mxu0 %v1056
  %1074 = vmatprep.subr.bf16.mxu0 0
  %1075 = vmatpush1.bf16.msra.mxu0 %v1057
  %1076 = vmatprep.subr.bf16.mxu0 0
  %1077 = vmatpush1.bf16.msra.mxu0 %v1058
  %1078 = vmatprep.subr.bf16.mxu0 0
  %1079 = vmatpush1.bf16.msra.mxu0 %v1059
  %1080 = vmatprep.subr.bf16.mxu0 0
  %1081 = vmatpush1.bf16.msra.mxu0 %v1060
  %1082 = vmatprep.subr.bf16.mxu0 0
  %1083 = vmatpush1.bf16.msra.mxu0 %v1061
  %1084 = vmatprep.subr.bf16.mxu0 0
  %1085 = vmatpush1.bf16.msra.mxu0 %v1062
  %1086 = vmatprep.subr.bf16.mxu0 0
  %1087 = vmatpush1.bf16.msra.mxu0 %v1063
  %1088 = vmatprep.subr.bf16.mxu0 0
  %1089 = vmatpush1.bf16.msra.mxu0 0
  %1090 = vmatprep.subr.bf16.mxu0 0
  %1091 = vmatpush1.bf16.msra.mxu0 0
  %1092 = vmatprep.subr.bf16.mxu0 0
  %1093 = vmatpush1.bf16.msra.mxu0 0
  %1094 = vmatprep.subr.bf16.mxu0 0
  %1095 = vmatpush1.bf16.msra.mxu0 0
  %1096 = vmatprep.subr.bf16.mxu0 0
  %1097 = vmatpush1.bf16.msra.mxu0 0
  %1098 = vmatprep.subr.bf16.mxu0 0
  %1099 = vmatpush1.bf16.msra.mxu0 0
  %1100 = vmatprep.subr.bf16.mxu0 0
  %1101 = vmatpush1.bf16.msra.mxu0 0
  %1102 = vmatprep.subr.bf16.mxu0 0
  %1103 = vmatpush1.bf16.msra.mxu0 0
  %1104 = vmatprep.mubr.bf16.mxu0 0
  %1105 = vmatmul.mubr.bf16.gmra.mrb[0].mxu0 %v1006
  %v1106 = vpop.f32.mrb[0].mxu0
  %v1107 = vadd.f32 0.0, %v1106
  %v1108 = vpop.f32.mrb[0].mxu0
  %v1109 = vpop.f32.mrb[0].mxu0
  %v1110 = vpop.f32.mrb[0].mxu0
  %1111 = vdwg.mxu0
  %v1112 = vadd.f32 %v1001, %v1107
  %v1113 = vpack.c.bf16 %v790, %v790
  %s1114 = scalar_lea.vmem %s4, 192
  %v1115 = vld [vmem:[%s1114] sm:$0xf]
  %v1116 = vld [vmem:[%s1114 + $0x4] sm:$0xf]
  %v1117 = vld [vmem:[%s1114 + $0x8] sm:$0xf]
  %v1118 = vld [vmem:[%s1114 + $0xc] sm:$0xf]
  %v1119 = vld [vmem:[%s1114 + $0x10] sm:$0xf]
  %v1120 = vld [vmem:[%s1114 + $0x14] sm:$0xf]
  %v1121 = vld [vmem:[%s1114 + $0x18] sm:$0xf]
  %v1122 = vld [vmem:[%s1114 + $0x1c] sm:$0xf]
  %v1123 = vld [vmem:[%s1114 + $0x20] sm:$0xf]
  %v1124 = vld [vmem:[%s1114 + $0x24] sm:$0xf]
  %v1125 = vld [vmem:[%s1114 + $0x28] sm:$0xf]
  %v1126 = vld [vmem:[%s1114 + $0x2c] sm:$0xf]
  %v1127 = vld [vmem:[%s1114 + $0x30] sm:$0xf]
  %v1128 = vld [vmem:[%s1114 + $0x34] sm:$0xf]
  %v1129 = vld [vmem:[%s1114 + $0x38] sm:$0xf]
  %v1130 = vld [vmem:[%s1114 + $0x3c] sm:$0xf]
  %v1147 = vunpack.c.l.b16 %v1115
  %v1148 = vunpack.c.l.b16 %v1116
  %v1149 = vunpack.c.l.b16 %v1117
  %v1150 = vunpack.c.l.b16 %v1118
  %v1151 = vunpack.c.l.b16 %v1119
  %v1152 = vunpack.c.l.b16 %v1120
  %v1153 = vunpack.c.l.b16 %v1121
  %v1154 = vunpack.c.l.b16 %v1122
  %v1155 = vunpack.c.l.b16 %v1123
  %v1156 = vunpack.c.l.b16 %v1124
  %v1157 = vunpack.c.l.b16 %v1125
  %v1158 = vunpack.c.l.b16 %v1126
  %v1159 = vunpack.c.l.b16 %v1127
  %v1160 = vunpack.c.l.b16 %v1128
  %v1161 = vunpack.c.l.b16 %v1129
  %v1162 = vunpack.c.l.b16 %v1130
  %v1163 = vpack.c.b16 %v1148, %v1147
  %v1164 = vpack.c.b16 %v1150, %v1149
  %v1165 = vpack.c.b16 %v1152, %v1151
  %v1166 = vpack.c.b16 %v1154, %v1153
  %v1167 = vpack.c.b16 %v1156, %v1155
  %v1168 = vpack.c.b16 %v1158, %v1157
  %v1169 = vpack.c.b16 %v1160, %v1159
  %v1170 = vpack.c.b16 %v1162, %v1161
  %1179 = vmatprep.subr.bf16.mxu0 0
  %1180 = vmatpush1.bf16.msra.mxu0 %v1163
  %1181 = vmatprep.subr.bf16.mxu0 0
  %1182 = vmatpush1.bf16.msra.mxu0 %v1164
  %1183 = vmatprep.subr.bf16.mxu0 0
  %1184 = vmatpush1.bf16.msra.mxu0 %v1165
  %1185 = vmatprep.subr.bf16.mxu0 0
  %1186 = vmatpush1.bf16.msra.mxu0 %v1166
  %1187 = vmatprep.subr.bf16.mxu0 0
  %1188 = vmatpush1.bf16.msra.mxu0 %v1167
  %1189 = vmatprep.subr.bf16.mxu0 0
  %1190 = vmatpush1.bf16.msra.mxu0 %v1168
  %1191 = vmatprep.subr.bf16.mxu0 0
  %1192 = vmatpush1.bf16.msra.mxu0 %v1169
  %1193 = vmatprep.subr.bf16.mxu0 0
  %1194 = vmatpush1.bf16.msra.mxu0 %v1170
  %1195 = vmatprep.subr.bf16.mxu0 0
  %1196 = vmatpush1.bf16.msra.mxu0 0
  %1197 = vmatprep.subr.bf16.mxu0 0
  %1198 = vmatpush1.bf16.msra.mxu0 0
  %1199 = vmatprep.subr.bf16.mxu0 0
  %1200 = vmatpush1.bf16.msra.mxu0 0
  %1201 = vmatprep.subr.bf16.mxu0 0
  %1202 = vmatpush1.bf16.msra.mxu0 0
  %1203 = vmatprep.subr.bf16.mxu0 0
  %1204 = vmatpush1.bf16.msra.mxu0 0
  %1205 = vmatprep.subr.bf16.mxu0 0
  %1206 = vmatpush1.bf16.msra.mxu0 0
  %1207 = vmatprep.subr.bf16.mxu0 0
  %1208 = vmatpush1.bf16.msra.mxu0 0
  %1209 = vmatprep.subr.bf16.mxu0 0
  %1210 = vmatpush1.bf16.msra.mxu0 0
  %1211 = vmatprep.mubr.bf16.mxu0 0
  %1212 = vmatmul.mubr.bf16.gmra.mrb[0].mxu0 %v1113
  %v1213 = vpop.f32.mrb[0].mxu0
  %v1214 = vadd.f32 0.0, %v1213
  %v1215 = vpop.f32.mrb[0].mxu0
  %v1216 = vpop.f32.mrb[0].mxu0
  %v1217 = vpop.f32.mrb[0].mxu0
  %1218 = vdwg.mxu0
  %v1219 = vadd.f32 %v1112, %v1214
  %v1220 = vpack.c.bf16 %v791, %v791
  %s1221 = scalar_lea.vmem %s4, 256
  %v1222 = vld [vmem:[%s1221] sm:$0xf]
  %v1223 = vld [vmem:[%s1221 + $0x4] sm:$0xf]
  %v1224 = vld [vmem:[%s1221 + $0x8] sm:$0xf]
  %v1225 = vld [vmem:[%s1221 + $0xc] sm:$0xf]
  %v1226 = vld [vmem:[%s1221 + $0x10] sm:$0xf]
  %v1227 = vld [vmem:[%s1221 + $0x14] sm:$0xf]
  %v1228 = vld [vmem:[%s1221 + $0x18] sm:$0xf]
  %v1229 = vld [vmem:[%s1221 + $0x1c] sm:$0xf]
  %v1230 = vld [vmem:[%s1221 + $0x20] sm:$0xf]
  %v1231 = vld [vmem:[%s1221 + $0x24] sm:$0xf]
  %v1232 = vld [vmem:[%s1221 + $0x28] sm:$0xf]
  %v1233 = vld [vmem:[%s1221 + $0x2c] sm:$0xf]
  %v1234 = vld [vmem:[%s1221 + $0x30] sm:$0xf]
  %v1235 = vld [vmem:[%s1221 + $0x34] sm:$0xf]
  %v1236 = vld [vmem:[%s1221 + $0x38] sm:$0xf]
  %v1237 = vld [vmem:[%s1221 + $0x3c] sm:$0xf]
  %v1254 = vunpack.c.l.b16 %v1222
  %v1255 = vunpack.c.l.b16 %v1223
  %v1256 = vunpack.c.l.b16 %v1224
  %v1257 = vunpack.c.l.b16 %v1225
  %v1258 = vunpack.c.l.b16 %v1226
  %v1259 = vunpack.c.l.b16 %v1227
  %v1260 = vunpack.c.l.b16 %v1228
  %v1261 = vunpack.c.l.b16 %v1229
  %v1262 = vunpack.c.l.b16 %v1230
  %v1263 = vunpack.c.l.b16 %v1231
  %v1264 = vunpack.c.l.b16 %v1232
  %v1265 = vunpack.c.l.b16 %v1233
  %v1266 = vunpack.c.l.b16 %v1234
  %v1267 = vunpack.c.l.b16 %v1235
  %v1268 = vunpack.c.l.b16 %v1236
  %v1269 = vunpack.c.l.b16 %v1237
  %v1270 = vpack.c.b16 %v1255, %v1254
  %v1271 = vpack.c.b16 %v1257, %v1256
  %v1272 = vpack.c.b16 %v1259, %v1258
  %v1273 = vpack.c.b16 %v1261, %v1260
  %v1274 = vpack.c.b16 %v1263, %v1262
  %v1275 = vpack.c.b16 %v1265, %v1264
  %v1276 = vpack.c.b16 %v1267, %v1266
  %v1277 = vpack.c.b16 %v1269, %v1268
  %1286 = vmatprep.subr.bf16.mxu0 0
  %1287 = vmatpush1.bf16.msra.mxu0 %v1270
  %1288 = vmatprep.subr.bf16.mxu0 0
  %1289 = vmatpush1.bf16.msra.mxu0 %v1271
  %1290 = vmatprep.subr.bf16.mxu0 0
  %1291 = vmatpush1.bf16.msra.mxu0 %v1272
  %1292 = vmatprep.subr.bf16.mxu0 0
  %1293 = vmatpush1.bf16.msra.mxu0 %v1273
  %1294 = vmatprep.subr.bf16.mxu0 0
  %1295 = vmatpush1.bf16.msra.mxu0 %v1274
  %1296 = vmatprep.subr.bf16.mxu0 0
  %1297 = vmatpush1.bf16.msra.mxu0 %v1275
  %1298 = vmatprep.subr.bf16.mxu0 0
  %1299 = vmatpush1.bf16.msra.mxu0 %v1276
  %1300 = vmatprep.subr.bf16.mxu0 0
  %1301 = vmatpush1.bf16.msra.mxu0 %v1277
  %1302 = vmatprep.subr.bf16.mxu0 0
  %1303 = vmatpush1.bf16.msra.mxu0 0
  %1304 = vmatprep.subr.bf16.mxu0 0
  %1305 = vmatpush1.bf16.msra.mxu0 0
  %1306 = vmatprep.subr.bf16.mxu0 0
  %1307 = vmatpush1.bf16.msra.mxu0 0
  %1308 = vmatprep.subr.bf16.mxu0 0
  %1309 = vmatpush1.bf16.msra.mxu0 0
  %1310 = vmatprep.subr.bf16.mxu0 0
  %1311 = vmatpush1.bf16.msra.mxu0 0
  %1312 = vmatprep.subr.bf16.mxu0 0
  %1313 = vmatpush1.bf16.msra.mxu0 0
  %1314 = vmatprep.subr.bf16.mxu0 0
  %1315 = vmatpush1.bf16.msra.mxu0 0
  %1316 = vmatprep.subr.bf16.mxu0 0
  %1317 = vmatpush1.bf16.msra.mxu0 0
  %1318 = vmatprep.mubr.bf16.mxu0 0
  %1319 = vmatmul.mubr.bf16.gmra.mrb[0].mxu0 %v1220
  %v1320 = vpop.f32.mrb[0].mxu0
  %v1321 = vadd.f32 0.0, %v1320
  %v1322 = vpop.f32.mrb[0].mxu0
  %v1323 = vpop.f32.mrb[0].mxu0
  %v1324 = vpop.f32.mrb[0].mxu0
  %1325 = vdwg.mxu0
  %v1326 = vadd.f32 %v1219, %v1321
  %v1327 = vpack.c.bf16 %v792, %v792
  %s1328 = scalar_lea.vmem %s4, 320
  %v1329 = vld [vmem:[%s1328] sm:$0xf]
  %v1330 = vld [vmem:[%s1328 + $0x4] sm:$0xf]
  %v1331 = vld [vmem:[%s1328 + $0x8] sm:$0xf]
  %v1332 = vld [vmem:[%s1328 + $0xc] sm:$0xf]
  %v1333 = vld [vmem:[%s1328 + $0x10] sm:$0xf]
  %v1334 = vld [vmem:[%s1328 + $0x14] sm:$0xf]
  %v1335 = vld [vmem:[%s1328 + $0x18] sm:$0xf]
  %v1336 = vld [vmem:[%s1328 + $0x1c] sm:$0xf]
  %v1337 = vld [vmem:[%s1328 + $0x20] sm:$0xf]
  %v1338 = vld [vmem:[%s1328 + $0x24] sm:$0xf]
  %v1339 = vld [vmem:[%s1328 + $0x28] sm:$0xf]
  %v1340 = vld [vmem:[%s1328 + $0x2c] sm:$0xf]
  %v1341 = vld [vmem:[%s1328 + $0x30] sm:$0xf]
  %v1342 = vld [vmem:[%s1328 + $0x34] sm:$0xf]
  %v1343 = vld [vmem:[%s1328 + $0x38] sm:$0xf]
  %v1344 = vld [vmem:[%s1328 + $0x3c] sm:$0xf]
  %v1361 = vunpack.c.l.b16 %v1329
  %v1362 = vunpack.c.l.b16 %v1330
  %v1363 = vunpack.c.l.b16 %v1331
  %v1364 = vunpack.c.l.b16 %v1332
  %v1365 = vunpack.c.l.b16 %v1333
  %v1366 = vunpack.c.l.b16 %v1334
  %v1367 = vunpack.c.l.b16 %v1335
  %v1368 = vunpack.c.l.b16 %v1336
  %v1369 = vunpack.c.l.b16 %v1337
  %v1370 = vunpack.c.l.b16 %v1338
  %v1371 = vunpack.c.l.b16 %v1339
  %v1372 = vunpack.c.l.b16 %v1340
  %v1373 = vunpack.c.l.b16 %v1341
  %v1374 = vunpack.c.l.b16 %v1342
  %v1375 = vunpack.c.l.b16 %v1343
  %v1376 = vunpack.c.l.b16 %v1344
  %v1377 = vpack.c.b16 %v1362, %v1361
  %v1378 = vpack.c.b16 %v1364, %v1363
  %v1379 = vpack.c.b16 %v1366, %v1365
  %v1380 = vpack.c.b16 %v1368, %v1367
  %v1381 = vpack.c.b16 %v1370, %v1369
  %v1382 = vpack.c.b16 %v1372, %v1371
  %v1383 = vpack.c.b16 %v1374, %v1373
  %v1384 = vpack.c.b16 %v1376, %v1375
  %1393 = vmatprep.subr.bf16.mxu0 0
  %1394 = vmatpush1.bf16.msra.mxu0 %v1377
  %1395 = vmatprep.subr.bf16.mxu0 0
  %1396 = vmatpush1.bf16.msra.mxu0 %v1378
  %1397 = vmatprep.subr.bf16.mxu0 0
  %1398 = vmatpush1.bf16.msra.mxu0 %v1379
  %1399 = vmatprep.subr.bf16.mxu0 0
  %1400 = vmatpush1.bf16.msra.mxu0 %v1380
  %1401 = vmatprep.subr.bf16.mxu0 0
  %1402 = vmatpush1.bf16.msra.mxu0 %v1381
  %1403 = vmatprep.subr.bf16.mxu0 0
  %1404 = vmatpush1.bf16.msra.mxu0 %v1382
  %1405 = vmatprep.subr.bf16.mxu0 0
  %1406 = vmatpush1.bf16.msra.mxu0 %v1383
  %1407 = vmatprep.subr.bf16.mxu0 0
  %1408 = vmatpush1.bf16.msra.mxu0 %v1384
  %1409 = vmatprep.subr.bf16.mxu0 0
  %1410 = vmatpush1.bf16.msra.mxu0 0
  %1411 = vmatprep.subr.bf16.mxu0 0
  %1412 = vmatpush1.bf16.msra.mxu0 0
  %1413 = vmatprep.subr.bf16.mxu0 0
  %1414 = vmatpush1.bf16.msra.mxu0 0
  %1415 = vmatprep.subr.bf16.mxu0 0
  %1416 = vmatpush1.bf16.msra.mxu0 0
  %1417 = vmatprep.subr.bf16.mxu0 0
  %1418 = vmatpush1.bf16.msra.mxu0 0
  %1419 = vmatprep.subr.bf16.mxu0 0
  %1420 = vmatpush1.bf16.msra.mxu0 0
  %1421 = vmatprep.subr.bf16.mxu0 0
  %1422 = vmatpush1.bf16.msra.mxu0 0
  %1423 = vmatprep.subr.bf16.mxu0 0
  %1424 = vmatpush1.bf16.msra.mxu0 0
  %1425 = vmatprep.mubr.bf16.mxu0 0
  %1426 = vmatmul.mubr.bf16.gmra.mrb[0].mxu0 %v1327
  %v1427 = vpop.f32.mrb[0].mxu0
  %v1428 = vadd.f32 0.0, %v1427
  %v1429 = vpop.f32.mrb[0].mxu0
  %v1430 = vpop.f32.mrb[0].mxu0
  %v1431 = vpop.f32.mrb[0].mxu0
  %1432 = vdwg.mxu0
  %v1433 = vadd.f32 %v1326, %v1428
  %v1434 = vpack.c.bf16 %v793, %v793
  %s1435 = scalar_lea.vmem %s4, 384
  %v1436 = vld [vmem:[%s1435] sm:$0xf]
  %v1437 = vld [vmem:[%s1435 + $0x4] sm:$0xf]
  %v1438 = vld [vmem:[%s1435 + $0x8] sm:$0xf]
  %v1439 = vld [vmem:[%s1435 + $0xc] sm:$0xf]
  %v1440 = vld [vmem:[%s1435 + $0x10] sm:$0xf]
  %v1441 = vld [vmem:[%s1435 + $0x14] sm:$0xf]
  %v1442 = vld [vmem:[%s1435 + $0x18] sm:$0xf]
  %v1443 = vld [vmem:[%s1435 + $0x1c] sm:$0xf]
  %v1444 = vld [vmem:[%s1435 + $0x20] sm:$0xf]
  %v1445 = vld [vmem:[%s1435 + $0x24] sm:$0xf]
  %v1446 = vld [vmem:[%s1435 + $0x28] sm:$0xf]
  %v1447 = vld [vmem:[%s1435 + $0x2c] sm:$0xf]
  %v1448 = vld [vmem:[%s1435 + $0x30] sm:$0xf]
  %v1449 = vld [vmem:[%s1435 + $0x34] sm:$0xf]
  %v1450 = vld [vmem:[%s1435 + $0x38] sm:$0xf]
  %v1451 = vld [vmem:[%s1435 + $0x3c] sm:$0xf]
  %v1468 = vunpack.c.l.b16 %v1436
  %v1469 = vunpack.c.l.b16 %v1437
  %v1470 = vunpack.c.l.b16 %v1438
  %v1471 = vunpack.c.l.b16 %v1439
  %v1472 = vunpack.c.l.b16 %v1440
  %v1473 = vunpack.c.l.b16 %v1441
  %v1474 = vunpack.c.l.b16 %v1442
  %v1475 = vunpack.c.l.b16 %v1443
  %v1476 = vunpack.c.l.b16 %v1444
  %v1477 = vunpack.c.l.b16 %v1445
  %v1478 = vunpack.c.l.b16 %v1446
  %v1479 = vunpack.c.l.b16 %v1447
  %v1480 = vunpack.c.l.b16 %v1448
  %v1481 = vunpack.c.l.b16 %v1449
  %v1482 = vunpack.c.l.b16 %v1450
  %v1483 = vunpack.c.l.b16 %v1451
  %v1484 = vpack.c.b16 %v1469, %v1468
  %v1485 = vpack.c.b16 %v1471, %v1470
  %v1486 = vpack.c.b16 %v1473, %v1472
  %v1487 = vpack.c.b16 %v1475, %v1474
  %v1488 = vpack.c.b16 %v1477, %v1476
  %v1489 = vpack.c.b16 %v1479, %v1478
  %v1490 = vpack.c.b16 %v1481, %v1480
  %v1491 = vpack.c.b16 %v1483, %v1482
  %1500 = vmatprep.subr.bf16.mxu0 0
  %1501 = vmatpush1.bf16.msra.mxu0 %v1484
  %1502 = vmatprep.subr.bf16.mxu0 0
  %1503 = vmatpush1.bf16.msra.mxu0 %v1485
  %1504 = vmatprep.subr.bf16.mxu0 0
  %1505 = vmatpush1.bf16.msra.mxu0 %v1486
  %1506 = vmatprep.subr.bf16.mxu0 0
  %1507 = vmatpush1.bf16.msra.mxu0 %v1487
  %1508 = vmatprep.subr.bf16.mxu0 0
  %1509 = vmatpush1.bf16.msra.mxu0 %v1488
  %1510 = vmatprep.subr.bf16.mxu0 0
  %1511 = vmatpush1.bf16.msra.mxu0 %v1489
  %1512 = vmatprep.subr.bf16.mxu0 0
  %1513 = vmatpush1.bf16.msra.mxu0 %v1490
  %1514 = vmatprep.subr.bf16.mxu0 0
  %1515 = vmatpush1.bf16.msra.mxu0 %v1491
  %1516 = vmatprep.subr.bf16.mxu0 0
  %1517 = vmatpush1.bf16.msra.mxu0 0
  %1518 = vmatprep.subr.bf16.mxu0 0
  %1519 = vmatpush1.bf16.msra.mxu0 0
  %1520 = vmatprep.subr.bf16.mxu0 0
  %1521 = vmatpush1.bf16.msra.mxu0 0
  %1522 = vmatprep.subr.bf16.mxu0 0
  %1523 = vmatpush1.bf16.msra.mxu0 0
  %1524 = vmatprep.subr.bf16.mxu0 0
  %1525 = vmatpush1.bf16.msra.mxu0 0
  %1526 = vmatprep.subr.bf16.mxu0 0
  %1527 = vmatpush1.bf16.msra.mxu0 0
  %1528 = vmatprep.subr.bf16.mxu0 0
  %1529 = vmatpush1.bf16.msra.mxu0 0
  %1530 = vmatprep.subr.bf16.mxu0 0
  %1531 = vmatpush1.bf16.msra.mxu0 0
  %1532 = vmatprep.mubr.bf16.mxu0 0
  %1533 = vmatmul.mubr.bf16.gmra.mrb[0].mxu0 %v1434
  %v1534 = vpop.f32.mrb[0].mxu0
  %v1535 = vadd.f32 0.0, %v1534
  %v1536 = vpop.f32.mrb[0].mxu0
  %v1537 = vpop.f32.mrb[0].mxu0
  %v1538 = vpop.f32.mrb[0].mxu0
  %1539 = vdwg.mxu0
  %v1540 = vadd.f32 %v1433, %v1535
  %v1541 = vpack.c.bf16 %v794, %v794
  %s1542 = scalar_lea.vmem %s4, 448
  %v1543 = vld [vmem:[%s1542] sm:$0xf]
  %v1544 = vld [vmem:[%s1542 + $0x4] sm:$0xf]
  %v1545 = vld [vmem:[%s1542 + $0x8] sm:$0xf]
  %v1546 = vld [vmem:[%s1542 + $0xc] sm:$0xf]
  %v1547 = vld [vmem:[%s1542 + $0x10] sm:$0xf]
  %v1548 = vld [vmem:[%s1542 + $0x14] sm:$0xf]
  %v1549 = vld [vmem:[%s1542 + $0x18] sm:$0xf]
  %v1550 = vld [vmem:[%s1542 + $0x1c] sm:$0xf]
  %v1551 = vld [vmem:[%s1542 + $0x20] sm:$0xf]
  %v1552 = vld [vmem:[%s1542 + $0x24] sm:$0xf]
  %v1553 = vld [vmem:[%s1542 + $0x28] sm:$0xf]
  %v1554 = vld [vmem:[%s1542 + $0x2c] sm:$0xf]
  %v1555 = vld [vmem:[%s1542 + $0x30] sm:$0xf]
  %v1556 = vld [vmem:[%s1542 + $0x34] sm:$0xf]
  %v1557 = vld [vmem:[%s1542 + $0x38] sm:$0xf]
  %v1558 = vld [vmem:[%s1542 + $0x3c] sm:$0xf]
  %v1575 = vunpack.c.l.b16 %v1543
  %v1576 = vunpack.c.l.b16 %v1544
  %v1577 = vunpack.c.l.b16 %v1545
  %v1578 = vunpack.c.l.b16 %v1546
  %v1579 = vunpack.c.l.b16 %v1547
  %v1580 = vunpack.c.l.b16 %v1548
  %v1581 = vunpack.c.l.b16 %v1549
  %v1582 = vunpack.c.l.b16 %v1550
  %v1583 = vunpack.c.l.b16 %v1551
  %v1584 = vunpack.c.l.b16 %v1552
  %v1585 = vunpack.c.l.b16 %v1553
  %v1586 = vunpack.c.l.b16 %v1554
  %v1587 = vunpack.c.l.b16 %v1555
  %v1588 = vunpack.c.l.b16 %v1556
  %v1589 = vunpack.c.l.b16 %v1557
  %v1590 = vunpack.c.l.b16 %v1558
  %v1591 = vpack.c.b16 %v1576, %v1575
  %v1592 = vpack.c.b16 %v1578, %v1577
  %v1593 = vpack.c.b16 %v1580, %v1579
  %v1594 = vpack.c.b16 %v1582, %v1581
  %v1595 = vpack.c.b16 %v1584, %v1583
  %v1596 = vpack.c.b16 %v1586, %v1585
  %v1597 = vpack.c.b16 %v1588, %v1587
  %v1598 = vpack.c.b16 %v1590, %v1589
  %1607 = vmatprep.subr.bf16.mxu0 0
  %1608 = vmatpush1.bf16.msra.mxu0 %v1591
  %1609 = vmatprep.subr.bf16.mxu0 0
  %1610 = vmatpush1.bf16.msra.mxu0 %v1592
  %1611 = vmatprep.subr.bf16.mxu0 0
  %1612 = vmatpush1.bf16.msra.mxu0 %v1593
  %1613 = vmatprep.subr.bf16.mxu0 0
  %1614 = vmatpush1.bf16.msra.mxu0 %v1594
  %1615 = vmatprep.subr.bf16.mxu0 0
  %1616 = vmatpush1.bf16.msra.mxu0 %v1595
  %1617 = vmatprep.subr.bf16.mxu0 0
  %1618 = vmatpush1.bf16.msra.mxu0 %v1596
  %1619 = vmatprep.subr.bf16.mxu0 0
  %1620 = vmatpush1.bf16.msra.mxu0 %v1597
  %1621 = vmatprep.subr.bf16.mxu0 0
  %1622 = vmatpush1.bf16.msra.mxu0 %v1598
  %1623 = vmatprep.subr.bf16.mxu0 0
  %1624 = vmatpush1.bf16.msra.mxu0 0
  %1625 = vmatprep.subr.bf16.mxu0 0
  %1626 = vmatpush1.bf16.msra.mxu0 0
  %1627 = vmatprep.subr.bf16.mxu0 0
  %1628 = vmatpush1.bf16.msra.mxu0 0
  %1629 = vmatprep.subr.bf16.mxu0 0
  %1630 = vmatpush1.bf16.msra.mxu0 0
  %1631 = vmatprep.subr.bf16.mxu0 0
  %1632 = vmatpush1.bf16.msra.mxu0 0
  %1633 = vmatprep.subr.bf16.mxu0 0
  %1634 = vmatpush1.bf16.msra.mxu0 0
  %1635 = vmatprep.subr.bf16.mxu0 0
  %1636 = vmatpush1.bf16.msra.mxu0 0
  %1637 = vmatprep.subr.bf16.mxu0 0
  %1638 = vmatpush1.bf16.msra.mxu0 0
  %1639 = vmatprep.mubr.bf16.mxu0 0
  %1640 = vmatmul.mubr.bf16.gmra.mrb[0].mxu0 %v1541
  %v1641 = vpop.f32.mrb[0].mxu0
  %v1642 = vadd.f32 0.0, %v1641
  %v1643 = vpop.f32.mrb[0].mxu0
  %v1644 = vpop.f32.mrb[0].mxu0
  %v1645 = vpop.f32.mrb[0].mxu0
  %1646 = vdwg.mxu0
  %v1647 = vadd.f32 %v1540, %v1642
  %vm1648 = vcmp.ge.f32.partialorder %v1647, 0.0
  %v1649 = vmul.f32 %v1647, 0.02
  %v1650 = vsel %vm1648, %v1647, %v1649
  %v1651 = vpack.c.bf16 %v1650, %v1650
  %v1652 = vld [vmem:[%s5] sm:$0xf]
  %v1653 = vld [vmem:[%s5 + $0x4] sm:$0xf]
  %v1654 = vld [vmem:[%s5 + $0x8] sm:$0xf]
  %v1655 = vld [vmem:[%s5 + $0xc] sm:$0xf]
  %v1656 = vld [vmem:[%s5 + $0x10] sm:$0xf]
  %v1657 = vld [vmem:[%s5 + $0x14] sm:$0xf]
  %v1658 = vld [vmem:[%s5 + $0x18] sm:$0xf]
  %v1659 = vld [vmem:[%s5 + $0x1c] sm:$0xf]
  %v1660 = vld [vmem:[%s5 + $0x20] sm:$0xf]
  %v1661 = vld [vmem:[%s5 + $0x24] sm:$0xf]
  %v1662 = vld [vmem:[%s5 + $0x28] sm:$0xf]
  %v1663 = vld [vmem:[%s5 + $0x2c] sm:$0xf]
  %v1664 = vld [vmem:[%s5 + $0x30] sm:$0xf]
  %v1665 = vld [vmem:[%s5 + $0x34] sm:$0xf]
  %v1666 = vld [vmem:[%s5 + $0x38] sm:$0xf]
  %v1667 = vld [vmem:[%s5 + $0x3c] sm:$0xf]
  %v1684 = vunpack.c.l.b16 %v1652
  %v1685 = vunpack.c.l.b16 %v1653
  %v1686 = vunpack.c.l.b16 %v1654
  %v1687 = vunpack.c.l.b16 %v1655
  %v1688 = vunpack.c.l.b16 %v1656
  %v1689 = vunpack.c.l.b16 %v1657
  %v1690 = vunpack.c.l.b16 %v1658
  %v1691 = vunpack.c.l.b16 %v1659
  %v1692 = vunpack.c.l.b16 %v1660
  %v1693 = vunpack.c.l.b16 %v1661
  %v1694 = vunpack.c.l.b16 %v1662
  %v1695 = vunpack.c.l.b16 %v1663
  %v1696 = vunpack.c.l.b16 %v1664
  %v1697 = vunpack.c.l.b16 %v1665
  %v1698 = vunpack.c.l.b16 %v1666
  %v1699 = vunpack.c.l.b16 %v1667
  %v1700 = vpack.c.b16 %v1685, %v1684
  %v1701 = vpack.c.b16 %v1687, %v1686
  %v1702 = vpack.c.b16 %v1689, %v1688
  %v1703 = vpack.c.b16 %v1691, %v1690
  %v1704 = vpack.c.b16 %v1693, %v1692
  %v1705 = vpack.c.b16 %v1695, %v1694
  %v1706 = vpack.c.b16 %v1697, %v1696
  %v1707 = vpack.c.b16 %v1699, %v1698
  %1716 = vmatprep.subr.bf16.mxu0 0
  %1717 = vmatpush1.bf16.msra.mxu0 %v1700
  %1718 = vmatprep.subr.bf16.mxu0 0
  %1719 = vmatpush1.bf16.msra.mxu0 %v1701
  %1720 = vmatprep.subr.bf16.mxu0 0
  %1721 = vmatpush1.bf16.msra.mxu0 %v1702
  %1722 = vmatprep.subr.bf16.mxu0 0
  %1723 = vmatpush1.bf16.msra.mxu0 %v1703
  %1724 = vmatprep.subr.bf16.mxu0 0
  %1725 = vmatpush1.bf16.msra.mxu0 %v1704
  %1726 = vmatprep.subr.bf16.mxu0 0
  %1727 = vmatpush1.bf16.msra.mxu0 %v1705
  %1728 = vmatprep.subr.bf16.mxu0 0
  %1729 = vmatpush1.bf16.msra.mxu0 %v1706
  %1730 = vmatprep.subr.bf16.mxu0 0
  %1731 = vmatpush1.bf16.msra.mxu0 %v1707
  %1732 = vmatprep.subr.bf16.mxu0 0
  %1733 = vmatpush1.bf16.msra.mxu0 0
  %1734 = vmatprep.subr.bf16.mxu0 0
  %1735 = vmatpush1.bf16.msra.mxu0 0
  %1736 = vmatprep.subr.bf16.mxu0 0
  %1737 = vmatpush1.bf16.msra.mxu0 0
  %1738 = vmatprep.subr.bf16.mxu0 0
  %1739 = vmatpush1.bf16.msra.mxu0 0
  %1740 = vmatprep.subr.bf16.mxu0 0
  %1741 = vmatpush1.bf16.msra.mxu0 0
  %1742 = vmatprep.subr.bf16.mxu0 0
  %1743 = vmatpush1.bf16.msra.mxu0 0
  %1744 = vmatprep.subr.bf16.mxu0 0
  %1745 = vmatpush1.bf16.msra.mxu0 0
  %1746 = vmatprep.subr.bf16.mxu0 0
  %1747 = vmatpush1.bf16.msra.mxu0 0
  %1748 = vmatprep.mubr.bf16.mxu0 0
  %1749 = vmatmul.mubr.bf16.gmra.mrb[0].mxu0 %v1651
  %v1750 = vpop.f32.mrb[0].mxu0
  %v1751 = vadd.f32 0.0, %v1750
  %v1752 = vpop.f32.mrb[0].mxu0
  %v1753 = vpop.f32.mrb[0].mxu0
  %v1754 = vpop.f32.mrb[0].mxu0
  %1755 = vdwg.mxu0
  %vm1756 = vcmp.ge.f32.partialorder %v1751, 0.0
  %v1757 = vmul.f32 %v1751, 0.02
  %v1758 = vsel %vm1756, %v1751, %v1757
  %1759 = vst [vmem:[%s6] sm:$0xff] %v1758
  // Predicated region
  $region26: #{face_encoder_forward.1} parent=0 // pred_check
    _
  $region27: #{face_encoder_forward.1} parent=0 // pred_check_branch
    %1761 = sbr.rel (0) target = $region29
  $region28: #{face_encoder_forward.1} parent=0 // pred_region
    _
  $region29: #{face_encoder_forward.1} parent=0 // pred_fallthru
    _
  // Predicated region
  $region30: #{face_encoder_forward.1} parent=0 // pred_check
    _
  $region31: #{face_encoder_forward.1} parent=0 // pred_check_branch
    %1763 = sbr.rel (0) target = $region33
  $region32: #{face_encoder_forward.1} parent=0 // pred_region
    _
  $region33: #{face_encoder_forward.1} parent=0 // pred_fallthru
    _

</llo_original>
